<compile_context>
chip_gen: v5e
topology: v5e:2x2
jax: 0.10.0
libtpu: 0.0.40
codegen_flags: <defaults>
</compile_context>

<pallas_src>
import jax
import jax.numpy as jnp
from jax.experimental import pallas as pl
from jax.experimental.pallas import tpu as pltpu


def _round_up(x, m):
    return (x + m - 1) // m * m


def _tpu_vmem_capacity_bytes():
    try:
        return int(pltpu.get_tpu_info().vmem_capacity_bytes)
    except Exception:
        return 128 * 1024 * 1024  # v5e/v6e physical VMEM


def _num_tensorcores():
    # 2 TensorCores per chip on v4 / v5p (megacore) and v7x; 1 on v5e / v6e.
    try:
        kind = jax.devices()[0].device_kind.lower()
    except Exception:
        return 1
    return 2 if any(t in kind for t in ("v4", "v5p", "v7")) else 1


def _default_compute_dtype():
    # v6e/v7x MXUs are bf16-native (2x256x256); f32 runs at a fraction of peak.
    try:
        kind = jax.devices()[0].device_kind.lower()
    except Exception:
        return jnp.float32
    return jnp.bfloat16 if any(t in kind for t in ("v6", "v7")) else jnp.float32


def _make_kernel(*, dils, maxpad, Wp, Hs, n_strips, Cin_pad, Cout, nb, Ls_pad,
                 im2col):
    """Build the kernel body.  All sizes / dilations / flags are static."""
    same_dil = all(d == dils[0] for d in dils)
    taps = [(ky, kx) for ky in range(3) for kx in range(3)]
    Ls_row = Hs * Wp  # flat stride of one row-strip in the padded image

    def strip_base():
        # Static 0 when there is a single strip -> fully static tap slices.
        return 0 if n_strips == 1 else pl.program_id(1) * Ls_row

    def tap_start(base, d, ky, kx):
        off = maxpad - d
        return base + (off + ky * d) * Wp + (off + kx * d)

    if im2col:
        def fill_patch(x_ref, patch_ref, d, base):
            # 9 shifted windows of the row-flattened image -> packed patch.
            # Destination rows/cols are sublane/lane aligned (unmasked vst);
            # source offsets are the unavoidable lane rotates (XLU slot).
            for bi in range(nb):
                for t, (ky, kx) in enumerate(taps):
                    patch_ref[t * Cin_pad:(t + 1) * Cin_pad,
                              bi * Ls_pad:(bi + 1) * Ls_pad] = \
                        x_ref[bi, :, pl.ds(tap_start(base, d, ky, kx), Ls_pad)]

        def finish(y, b4, o_ref):
            y = jnp.maximum(y + b4, 0.0)
            for bi in range(nb):
                o_ref[bi] = y[:, bi * Ls_pad:(bi + 1) * Ls_pad].astype(o_ref.dtype)

        if same_dil:
            def kernel(x_ref, w_ref, b_ref, w4_ref, b4_ref, o_ref, patch_ref):
                base = strip_base()
                fill_patch(x_ref, patch_ref, dils[0], base)
                # One fused matmul for all three branches: K=9*Cin_pad, M=3*Cout.
                h = jnp.dot(w_ref[...], patch_ref[...],
                            preferred_element_type=jnp.float32)
                h = jnp.maximum(h + b_ref[...], 0.0).astype(w4_ref.dtype)
                y = jnp.dot(w4_ref[...], h, preferred_element_type=jnp.float32)
                finish(y, b4_ref[...], o_ref)
        else:
            def kernel(x_ref, w_ref, b_ref, w4_ref, b4_ref, o_ref, patch_ref,
                       h_ref):
                base = strip_base()
                for br, d in enumerate(dils):
                    fill_patch(x_ref, patch_ref, d, base)
                    hb = jnp.dot(w_ref[br * Cout:(br + 1) * Cout, :],
                                 patch_ref[...],
                                 preferred_element_type=jnp.float32)
                    hb = jnp.maximum(hb + b_ref[br * Cout:(br + 1) * Cout, :], 0.0)
                    h_ref[br * Cout:(br + 1) * Cout, :] = hb.astype(h_ref.dtype)
                # Single fused 1x1 matmul over the stacked branches.
                y = jnp.dot(w4_ref[...], h_ref[...],
                            preferred_element_type=jnp.float32)
                finish(y, b4_ref[...], o_ref)
        return kernel

    # ---- tap-matmul path: weights arrive tap-major as (9, 3*Cout, Cin_pad) ----
    def kernel(x_ref, w_ref, b_ref, w4_ref, b4_ref, o_ref):
        base = strip_base()
        w4 = w4_ref[...]
        for bi in range(nb):
            if same_dil:
                d = dils[0]
                h = jnp.zeros((3 * Cout, Ls_pad), jnp.float32)
                for t, (ky, kx) in enumerate(taps):
                    xt = x_ref[bi, :, pl.ds(tap_start(base, d, ky, kx), Ls_pad)]
                    h = h + jnp.dot(w_ref[t], xt,
                                    preferred_element_type=jnp.float32)
                h = jnp.maximum(h + b_ref[...], 0.0).astype(w4.dtype)
            else:
                hs = []
                for br, d in enumerate(dils):
                    hb = jnp.zeros((Cout, Ls_pad), jnp.float32)
                    for t, (ky, kx) in enumerate(taps):
                        xt = x_ref[bi, :, pl.ds(tap_start(base, d, ky, kx),
                                                Ls_pad)]
                        hb = hb + jnp.dot(w_ref[t, br * Cout:(br + 1) * Cout, :],
                                          xt, preferred_element_type=jnp.float32)
                    hb = jnp.maximum(hb + b_ref[br * Cout:(br + 1) * Cout, :], 0.0)
                    hs.append(hb.astype(w4.dtype))
                h = jnp.concatenate(hs, axis=0)
            y = jnp.maximum(jnp.dot(w4, h, preferred_element_type=jnp.float32)
                            + b4_ref[...], 0.0)
            o_ref[bi] = y.astype(o_ref.dtype)
    return kernel


def encode_asp_forward(x_nchw, params, dils, compute_dtype=None,
                       batch_block=None, row_strip=None,
                       force_tap_matmul=False, single_buffer_weights=True):
    """Forward pass of Encode_ASP. x_nchw: (N, Cin, H, W) f32 -> (N, Cout, H, W) f32."""
    dils = tuple(int(d) for d in dils)
    assert all(d >= 1 for d in dils), "Encode_ASP requires every dilation >= 1"
    if compute_dtype is None:
        compute_dtype = _default_compute_dtype()
    compute_dtype = jnp.dtype(compute_dtype)
    item = compute_dtype.itemsize

    x = x_nchw.astype(jnp.float32)
    N, Cin, H, W = x.shape
    Cout = int(params["b1"].shape[-1])
    maxpad = max(dils)
    Hp, Wp = H + 2 * maxpad, W + 2 * maxpad

    sub = 8 if item >= 4 else 16                  # sublane multiple for dtype
    Cin_pad = _round_up(Cin, sub)
    same_dil = all(d == dils[0] for d in dils)
    im2col = (not force_tap_matmul) and Cin_pad < 128

    # ---------- generation-aware tiling: nb images/step and Hs rows/strip ----------
    cap = _tpu_vmem_capacity_bytes()
    budget = int(cap * 0.75)
    num_tc = _num_tensorcores()

    def strip_geom(Hs):
        Ls = Hs * Wp
        Ls_pad = _round_up(Ls, 128)               # lane-aligned per-image width
        # Max tap-slice start + Ls_pad must fit; then round Lin to 128.
        Lin = _round_up((H - Hs) * Wp + 2 * maxpad * (Wp + 1) + Ls_pad, 128)
        return Ls, Ls_pad, Lin

    def footprint(nb, Hs):
        Ls, Ls_pad, Lin = strip_geom(Hs)
        fp = 2 * nb * Cin_pad * Lin * item                       # input block x2
        fp += 2 * nb * Cout * Ls_pad * 4                         # output block x2
        wbytes = (3 * Cout * 9 * Cin_pad + 3 * Cout * Cout) * item + 4 * Cout * 4
        fp += wbytes * (1 if single_buffer_weights else 2)
        if im2col:
            fp += 9 * Cin_pad * nb * Ls_pad * item               # im2col patch
            if not same_dil:
                fp += 3 * Cout * nb * Ls_pad * item              # h scratch
            fp += 4 * Cout * nb * Ls_pad * 4                     # live f32 temps
        else:
            fp += 4 * Cout * Ls_pad * 4                          # per-image temps
        return fp

    def divisors_desc(n):
        return [d for d in range(n, 0, -1) if n % d == 0]

    nb, Hs = batch_block, row_strip
    if nb is None or Hs is None:
        nbs = [batch_block] if batch_block is not None else divisors_desc(N)
        hss = [row_strip] if row_strip is not None else divisors_desc(H)
        chosen = None
        for cand_nb in nbs:                       # prefer widest lane dim
            for cand_hs in hss:
                steps = (N // cand_nb) * (H // cand_hs)
                if (footprint(cand_nb, cand_hs) <= budget
                        and steps >= min(num_tc, N * H)):
                    chosen = (cand_nb, cand_hs)
                    break
            if chosen:
                break
        if chosen is None:                        # relax the >=num_tc-steps rule
            for cand_nb in nbs:
                for cand_hs in hss:
                    if footprint(cand_nb, cand_hs) <= budget:
                        chosen = (cand_nb, cand_hs)
                        break
                if chosen:
                    break
        if chosen is None:
            chosen = (nbs[-1], hss[-1])
        nb, Hs = chosen
    assert N % nb == 0 and H % Hs == 0, (N, nb, H, Hs)

    n_strips = H // Hs
    Ls, Ls_pad, Lin = strip_geom(Hs)
    fp = footprint(nb, Hs)
    if fp > int(cap * 0.95):
        raise ValueError(
            f"Encode_ASP tile footprint {fp / 2**20:.1f} MiB exceeds VMEM "
            f"capacity {cap / 2**20:.0f} MiB; reduce batch_block / row_strip.")
    vmem_limit = int(min(cap - (2 << 20), max(2 * fp, 16 << 20)))

    # ---------- input: NCHW -> pad channels + spatial -> row-flatten (no transposes) ----------
    xp = jnp.pad(x, ((0, 0), (0, Cin_pad - Cin),
                     (maxpad, maxpad), (maxpad, maxpad)))
    x_flat = xp.reshape(N, Cin_pad, Hp * Wp)
    x_flat = jnp.pad(x_flat, ((0, 0), (0, 0),
                              (0, Lin - Hp * Wp))).astype(compute_dtype)

    # ---------- pack weights: channels on sublanes, K = 9*Cin_pad ----------
    def pack_w3(w):                                # HWIO (3, 3, Cin, Cout)
        w = jnp.pad(w, ((0, 0), (0, 0), (0, Cin_pad - Cin), (0, 0)))
        return jnp.transpose(w.reshape(9 * Cin_pad, Cout))   # (Cout, 9*Cin_pad)

    w_stk = jnp.concatenate([pack_w3(params["w1"]), pack_w3(params["w2"]),
                             pack_w3(params["w3"])], axis=0).astype(compute_dtype)
    b_stk = jnp.concatenate([params["b1"].reshape(-1), params["b2"].reshape(-1),
                             params["b3"].reshape(-1)]
                            ).reshape(3 * Cout, 1).astype(jnp.float32)
    w4T = jnp.transpose(params["w4"]).astype(compute_dtype)      # (Cout, 3*Cout)
    b4 = params["b4"].reshape(Cout, 1).astype(jnp.float32)

    if im2col:
        w_in, w_shape = w_stk, (3 * Cout, 9 * Cin_pad)
    else:
        # tap-major (9, 3*Cout, Cin_pad): each per-tap matmul reads w_ref[t].
        w_in = jnp.transpose(w_stk.reshape(3 * Cout, 9, Cin_pad), (1, 0, 2))
        w_shape = (9, 3 * Cout, Cin_pad)

    kernel = _make_kernel(dils=dils, maxpad=maxpad, Wp=Wp, Hs=Hs,
                          n_strips=n_strips, Cin_pad=Cin_pad, Cout=Cout,
                          nb=nb, Ls_pad=Ls_pad, im2col=im2col)

    scratch_shapes = []
    if im2col:
        scratch_shapes.append(pltpu.VMEM((9 * Cin_pad, nb * Ls_pad), compute_dtype))
        if not same_dil:
            scratch_shapes.append(pltpu.VMEM((3 * Cout, nb * Ls_pad), compute_dtype))

    flops = int(2 * N * H * Wp * (3 * 9 * Cin_pad * Cout + 3 * Cout * Cout))
    bytes_accessed = int(N * Cin_pad * Lin * item
                         + (w_stk.size + w4T.size) * item
                         + (b_stk.size + b4.size) * 4
                         + N * Cout * n_strips * Ls_pad * 4)
    cost = pl.CostEstimate(flops=flops, transcendentals=0,
                           bytes_accessed=bytes_accessed)

    def build(single_buf):
        def wspec(shape):
            # Grid-invariant weights/biases: single VMEM buffer is enough.
            kw = dict(pipeline_mode=pl.Buffered(1)) if single_buf else {}
            return pl.BlockSpec(shape, lambda g, s: (0,) * len(shape), **kw)

        return pl.pallas_call(
            kernel,
            out_shape=jax.ShapeDtypeStruct((N, Cout, n_strips * Ls_pad),
                                           jnp.float32),
            grid=(N // nb, n_strips),
            in_specs=[
                pl.BlockSpec((nb, Cin_pad, Lin), lambda g, s: (g, 0, 0)),
                wspec(w_shape),                  # packed 3x3 conv weights
                wspec((3 * Cout, 1)),            # stacked 3x3 conv bias
                wspec((Cout, 3 * Cout)),         # 1x1 conv weights^T
                wspec((Cout, 1)),                # 1x1 conv bias
            ],
            out_specs=pl.BlockSpec((nb, Cout, Ls_pad), lambda g, s: (g, 0, s)),
            scratch_shapes=scratch_shapes,
            compiler_params=pltpu.CompilerParams(
                dimension_semantics=("parallel", "parallel"),
                vmem_limit_bytes=vmem_limit),
            cost_estimate=cost,
        )(x_flat, w_in, b_stk, w4T, b4)

    if single_buffer_weights:
        try:
            y = build(True)
        except Exception:
            y = build(False)     # pipeline_mode unsupported here -> default buffering
    else:
        y = build(False)

    # (N, Cout, n_strips*Ls_pad): drop lane padding + horizontal-pad columns -> NCHW.
    y = y.reshape(N, Cout, n_strips, Ls_pad)[:, :, :, :Ls]
    y = y.reshape(N, Cout, n_strips, Hs, Wp).reshape(N, Cout, H, Wp)
    return y[:, :, :, :W]


def init_params(key, in_c, out_c):
    """Deterministic parameter init (PyTorch Conv2d-style uniform bounds), HWIO layout."""
    ks = jax.random.split(key, 8)

    def u(k, shape, fan_in):
        bound = 1.0 / float(fan_in) ** 0.5
        return jax.random.uniform(k, shape, jnp.float32, -bound, bound)

    fan3 = in_c * 3 * 3
    fan1 = out_c * 3
    return {
        "w1": u(ks[0], (3, 3, in_c, out_c), fan3), "b1": u(ks[1], (1, out_c), fan3),
        "w2": u(ks[2], (3, 3, in_c, out_c), fan3), "b2": u(ks[3], (1, out_c), fan3),
        "w3": u(ks[4], (3, 3, in_c, out_c), fan3), "b3": u(ks[5], (1, out_c), fan3),
        "w4": u(ks[6], (3 * out_c, out_c), fan1),  "b4": u(ks[7], (1, out_c), fan1),
    }


def reference_forward(x_nchw, params, dils):
    """Pure-JAX (lax.conv, HIGHEST precision) reference for correctness checking."""
    x = jnp.transpose(x_nchw, (0, 2, 3, 1)).astype(jnp.float32)
    outs = []
    for i, d in enumerate(dils):
        w = params[f"w{i + 1}"]
        b = params[f"b{i + 1}"]
        y = jax.lax.conv_general_dilated(
            x, w, window_strides=(1, 1), padding=((d, d), (d, d)),
            rhs_dilation=(d, d), dimension_numbers=("NHWC", "HWIO", "NHWC"),
            precision=jax.lax.Precision.HIGHEST)
        outs.append(jax.nn.relu(y + b))
    h = jnp.concatenate(outs, axis=-1)
    y = jax.nn.relu(jnp.einsum("nhwc,co->nhwo", h, params["w4"],
                               precision=jax.lax.Precision.HIGHEST) + params["b4"])
    return jnp.transpose(y, (0, 3, 1, 2))


if __name__ == "__main__":
    N, in_c, out_c, H, W = 2, 4, 8, 16, 16

    key = jax.random.PRNGKey(0)
    k_x, k_p = jax.random.split(key)
    x = jax.random.normal(k_x, (N, in_c, H, W), jnp.float32)   # NCHW like PyTorch
    params = init_params(k_p, in_c, out_c)

    def check(out, ref, tol, tag):
        out = jax.block_until_ready(out)
        assert out.shape == ref.shape, (tag, out.shape, ref.shape)
        err = float(jnp.max(jnp.abs(out - ref)))
        assert bool(jnp.allclose(out, ref, atol=tol, rtol=tol)), (tag, err)

    # Module defaults: dilation=1, grid=[0, 1, 1, 1]  ->  dils = (1, 1, 1).
    dils = (1, 1, 1)
    ref = jax.block_until_ready(reference_forward(x, params, dils))

    check(encode_asp_forward(x, params, dils, compute_dtype=jnp.float32),
          ref, 2e-3, "f32 im2col fused")
    check(encode_asp_forward(x, params, dils, compute_dtype=jnp.bfloat16),
          ref, 5e-2, "bf16 im2col fused")
    check(encode_asp_forward(x, params, dils, compute_dtype=jnp.float32,
                             row_strip=8),
          ref, 2e-3, "f32 row-strip grid")
    check(encode_asp_forward(x, params, dils, compute_dtype=jnp.float32,
                             force_tap_matmul=True),
          ref, 2e-3, "f32 tap-matmul path")

    # Mixed dilations (dilation=1, grid=[0, 1, 2, 3]) exercise the general path.
    dils2 = (1, 2, 3)
    ref2 = jax.block_until_ready(reference_forward(x, params, dils2))
    check(encode_asp_forward(x, params, dils2, compute_dtype=jnp.float32),
          ref2, 2e-3, "f32 mixed-dilation im2col")
    check(encode_asp_forward(x, params, dils2, compute_dtype=jnp.float32,
                             force_tap_matmul=True, row_strip=8),
          ref2, 2e-3, "f32 mixed-dilation tap-matmul + strips")

    print("KERNEL_OK")
</pallas_src>

<mosaic_0001>
module attributes {stable_mosaic.version = 11 : i64} {
  func.func @kernel(%arg0: i32, %arg1: i32, %arg2: memref<2x8x512xf32, #tpu.memory_space<vmem>>, %arg3: memref<24x72xf32, #tpu.memory_space<vmem>>, %arg4: memref<24x1xf32, #tpu.memory_space<vmem>>, %arg5: memref<8x24xf32, #tpu.memory_space<vmem>>, %arg6: memref<8x1xf32, #tpu.memory_space<vmem>>, %arg7: memref<2x8x384xf32, #tpu.memory_space<vmem>>, %arg8: memref<72x768xf32, #tpu.memory_space<vmem>>) attributes {dimension_semantics = [#tpu.dimension_semantics<parallel>, #tpu.dimension_semantics<parallel>], iteration_bounds = array<i64: 1, 1>, scalar_prefetch = 0 : i64, scratch_operands = 1 : i64, tpu.core_type = #tpu.core_type<tc>, window_params = [{transform_indices = @transform_0, window_bounds = array<i64: 2, 8, 512>}, {pipeline_mode = #tpu.pipeline_mode<synchronous>, transform_indices = @transform_1, window_bounds = array<i64: 24, 72>}, {pipeline_mode = #tpu.pipeline_mode<synchronous>, transform_indices = @transform_2, window_bounds = array<i64: 24, 1>}, {pipeline_mode = #tpu.pipeline_mode<synchronous>, transform_indices = @transform_3, window_bounds = array<i64: 8, 24>}, {pipeline_mode = #tpu.pipeline_mode<synchronous>, transform_indices = @transform_4, window_bounds = array<i64: 8, 1>}, {transform_indices = @transform_5, window_bounds = array<i64: 2, 8, 384>}]} {
    %c0 = arith.constant 0 : index
    %c0_0 = arith.constant 0 : index
    %c0_1 = arith.constant 0 : index
    %0 = vector.load %arg2[%c0, %c0_0, %c0_1] : memref<2x8x512xf32, #tpu.memory_space<vmem>>, vector<1x8x384xf32>
    %1 = vector.shape_cast %0 : vector<1x8x384xf32> to vector<8x384xf32>
    %c0_2 = arith.constant 0 : index
    %c0_3 = arith.constant 0 : index
    %2 = vector.load %arg8[%c0_2, %c0_3] : memref<72x768xf32, #tpu.memory_space<vmem>>, vector<8x384xf32>
    tpu.vector_store %arg8[%c0_2, %c0_3], %1 {strides = array<i32>} : memref<72x768xf32, #tpu.memory_space<vmem>>, vector<8x384xf32>,
    %c0_4 = arith.constant 0 : index
    %c0_5 = arith.constant 0 : index
    %c1 = arith.constant 1 : index
    %3 = vector.load %arg2[%c0_4, %c0_5, %c1] : memref<2x8x512xf32, #tpu.memory_space<vmem>>, vector<1x8x384xf32>
    %4 = vector.shape_cast %3 : vector<1x8x384xf32> to vector<8x384xf32>
    %c8 = arith.constant 8 : index
    %c0_6 = arith.constant 0 : index
    %5 = vector.load %arg8[%c8, %c0_6] : memref<72x768xf32, #tpu.memory_space<vmem>>, vector<8x384xf32>
    tpu.vector_store %arg8[%c8, %c0_6], %4 {strides = array<i32>} : memref<72x768xf32, #tpu.memory_space<vmem>>, vector<8x384xf32>,
    %c0_7 = arith.constant 0 : index
    %c0_8 = arith.constant 0 : index
    %c2 = arith.constant 2 : index
    %6 = vector.load %arg2[%c0_7, %c0_8, %c2] : memref<2x8x512xf32, #tpu.memory_space<vmem>>, vector<1x8x384xf32>
    %7 = vector.shape_cast %6 : vector<1x8x384xf32> to vector<8x384xf32>
    %c16 = arith.constant 16 : index
    %c0_9 = arith.constant 0 : index
    %8 = vector.load %arg8[%c16, %c0_9] : memref<72x768xf32, #tpu.memory_space<vmem>>, vector<8x384xf32>
    tpu.vector_store %arg8[%c16, %c0_9], %7 {strides = array<i32>} : memref<72x768xf32, #tpu.memory_space<vmem>>, vector<8x384xf32>,
    %c0_10 = arith.constant 0 : index
    %c0_11 = arith.constant 0 : index
    %c18 = arith.constant 18 : index
    %9 = vector.load %arg2[%c0_10, %c0_11, %c18] : memref<2x8x512xf32, #tpu.memory_space<vmem>>, vector<1x8x384xf32>
    %10 = vector.shape_cast %9 : vector<1x8x384xf32> to vector<8x384xf32>
    %c24 = arith.constant 24 : index
    %c0_12 = arith.constant 0 : index
    %11 = vector.load %arg8[%c24, %c0_12] : memref<72x768xf32, #tpu.memory_space<vmem>>, vector<8x384xf32>
    tpu.vector_store %arg8[%c24, %c0_12], %10 {strides = array<i32>} : memref<72x768xf32, #tpu.memory_space<vmem>>, vector<8x384xf32>,
    %c0_13 = arith.constant 0 : index
    %c0_14 = arith.constant 0 : index
    %c19 = arith.constant 19 : index
    %12 = vector.load %arg2[%c0_13, %c0_14, %c19] : memref<2x8x512xf32, #tpu.memory_space<vmem>>, vector<1x8x384xf32>
    %13 = vector.shape_cast %12 : vector<1x8x384xf32> to vector<8x384xf32>
    %c32 = arith.constant 32 : index
    %c0_15 = arith.constant 0 : index
    %14 = vector.load %arg8[%c32, %c0_15] : memref<72x768xf32, #tpu.memory_space<vmem>>, vector<8x384xf32>
    tpu.vector_store %arg8[%c32, %c0_15], %13 {strides = array<i32>} : memref<72x768xf32, #tpu.memory_space<vmem>>, vector<8x384xf32>,
    %c0_16 = arith.constant 0 : index
    %c0_17 = arith.constant 0 : index
    %c20 = arith.constant 20 : index
    %15 = vector.load %arg2[%c0_16, %c0_17, %c20] : memref<2x8x512xf32, #tpu.memory_space<vmem>>, vector<1x8x384xf32>
    %16 = vector.shape_cast %15 : vector<1x8x384xf32> to vector<8x384xf32>
    %c40 = arith.constant 40 : index
    %c0_18 = arith.constant 0 : index
    %17 = vector.load %arg8[%c40, %c0_18] : memref<72x768xf32, #tpu.memory_space<vmem>>, vector<8x384xf32>
    tpu.vector_store %arg8[%c40, %c0_18], %16 {strides = array<i32>} : memref<72x768xf32, #tpu.memory_space<vmem>>, vector<8x384xf32>,
    %c0_19 = arith.constant 0 : index
    %c0_20 = arith.constant 0 : index
    %c36 = arith.constant 36 : index
    %18 = vector.load %arg2[%c0_19, %c0_20, %c36] : memref<2x8x512xf32, #tpu.memory_space<vmem>>, vector<1x8x384xf32>
    %19 = vector.shape_cast %18 : vector<1x8x384xf32> to vector<8x384xf32>
    %c48 = arith.constant 48 : index
    %c0_21 = arith.constant 0 : index
    %20 = vector.load %arg8[%c48, %c0_21] : memref<72x768xf32, #tpu.memory_space<vmem>>, vector<8x384xf32>
    tpu.vector_store %arg8[%c48, %c0_21], %19 {strides = array<i32>} : memref<72x768xf32, #tpu.memory_space<vmem>>, vector<8x384xf32>,
    %c0_22 = arith.constant 0 : index
    %c0_23 = arith.constant 0 : index
    %c37 = arith.constant 37 : index
    %21 = vector.load %arg2[%c0_22, %c0_23, %c37] : memref<2x8x512xf32, #tpu.memory_space<vmem>>, vector<1x8x384xf32>
    %22 = vector.shape_cast %21 : vector<1x8x384xf32> to vector<8x384xf32>
    %c56 = arith.constant 56 : index
    %c0_24 = arith.constant 0 : index
    %23 = vector.load %arg8[%c56, %c0_24] : memref<72x768xf32, #tpu.memory_space<vmem>>, vector<8x384xf32>
    tpu.vector_store %arg8[%c56, %c0_24], %22 {strides = array<i32>} : memref<72x768xf32, #tpu.memory_space<vmem>>, vector<8x384xf32>,
    %c0_25 = arith.constant 0 : index
    %c0_26 = arith.constant 0 : index
    %c38 = arith.constant 38 : index
    %24 = vector.load %arg2[%c0_25, %c0_26, %c38] : memref<2x8x512xf32, #tpu.memory_space<vmem>>, vector<1x8x384xf32>
    %25 = vector.shape_cast %24 : vector<1x8x384xf32> to vector<8x384xf32>
    %c64 = arith.constant 64 : index
    %c0_27 = arith.constant 0 : index
    %26 = vector.load %arg8[%c64, %c0_27] : memref<72x768xf32, #tpu.memory_space<vmem>>, vector<8x384xf32>
    tpu.vector_store %arg8[%c64, %c0_27], %25 {strides = array<i32>} : memref<72x768xf32, #tpu.memory_space<vmem>>, vector<8x384xf32>,
    %c1_28 = arith.constant 1 : index
    %c0_29 = arith.constant 0 : index
    %c0_30 = arith.constant 0 : index
    %27 = vector.load %arg2[%c1_28, %c0_29, %c0_30] : memref<2x8x512xf32, #tpu.memory_space<vmem>>, vector<1x8x384xf32>
    %28 = vector.shape_cast %27 : vector<1x8x384xf32> to vector<8x384xf32>
    %c0_31 = arith.constant 0 : index
    %c384 = arith.constant 384 : index
    %29 = vector.load %arg8[%c0_31, %c384] : memref<72x768xf32, #tpu.memory_space<vmem>>, vector<8x384xf32>
    tpu.vector_store %arg8[%c0_31, %c384], %28 {strides = array<i32>} : memref<72x768xf32, #tpu.memory_space<vmem>>, vector<8x384xf32>,
    %c1_32 = arith.constant 1 : index
    %c0_33 = arith.constant 0 : index
    %c1_34 = arith.constant 1 : index
    %30 = vector.load %arg2[%c1_32, %c0_33, %c1_34] : memref<2x8x512xf32, #tpu.memory_space<vmem>>, vector<1x8x384xf32>
    %31 = vector.shape_cast %30 : vector<1x8x384xf32> to vector<8x384xf32>
    %c8_35 = arith.constant 8 : index
    %c384_36 = arith.constant 384 : index
    %32 = vector.load %arg8[%c8_35, %c384_36] : memref<72x768xf32, #tpu.memory_space<vmem>>, vector<8x384xf32>
    tpu.vector_store %arg8[%c8_35, %c384_36], %31 {strides = array<i32>} : memref<72x768xf32, #tpu.memory_space<vmem>>, vector<8x384xf32>,
    %c1_37 = arith.constant 1 : index
    %c0_38 = arith.constant 0 : index
    %c2_39 = arith.constant 2 : index
    %33 = vector.load %arg2[%c1_37, %c0_38, %c2_39] : memref<2x8x512xf32, #tpu.memory_space<vmem>>, vector<1x8x384xf32>
    %34 = vector.shape_cast %33 : vector<1x8x384xf32> to vector<8x384xf32>
    %c16_40 = arith.constant 16 : index
    %c384_41 = arith.constant 384 : index
    %35 = vector.load %arg8[%c16_40, %c384_41] : memref<72x768xf32, #tpu.memory_space<vmem>>, vector<8x384xf32>
    tpu.vector_store %arg8[%c16_40, %c384_41], %34 {strides = array<i32>} : memref<72x768xf32, #tpu.memory_space<vmem>>, vector<8x384xf32>,
    %c1_42 = arith.constant 1 : index
    %c0_43 = arith.constant 0 : index
    %c18_44 = arith.constant 18 : index
    %36 = vector.load %arg2[%c1_42, %c0_43, %c18_44] : memref<2x8x512xf32, #tpu.memory_space<vmem>>, vector<1x8x384xf32>
    %37 = vector.shape_cast %36 : vector<1x8x384xf32> to vector<8x384xf32>
    %c24_45 = arith.constant 24 : index
    %c384_46 = arith.constant 384 : index
    %38 = vector.load %arg8[%c24_45, %c384_46] : memref<72x768xf32, #tpu.memory_space<vmem>>, vector<8x384xf32>
    tpu.vector_store %arg8[%c24_45, %c384_46], %37 {strides = array<i32>} : memref<72x768xf32, #tpu.memory_space<vmem>>, vector<8x384xf32>,
    %c1_47 = arith.constant 1 : index
    %c0_48 = arith.constant 0 : index
    %c19_49 = arith.constant 19 : index
    %39 = vector.load %arg2[%c1_47, %c0_48, %c19_49] : memref<2x8x512xf32, #tpu.memory_space<vmem>>, vector<1x8x384xf32>
    %40 = vector.shape_cast %39 : vector<1x8x384xf32> to vector<8x384xf32>
    %c32_50 = arith.constant 32 : index
    %c384_51 = arith.constant 384 : index
    %41 = vector.load %arg8[%c32_50, %c384_51] : memref<72x768xf32, #tpu.memory_space<vmem>>, vector<8x384xf32>
    tpu.vector_store %arg8[%c32_50, %c384_51], %40 {strides = array<i32>} : memref<72x768xf32, #tpu.memory_space<vmem>>, vector<8x384xf32>,
    %c1_52 = arith.constant 1 : index
    %c0_53 = arith.constant 0 : index
    %c20_54 = arith.constant 20 : index
    %42 = vector.load %arg2[%c1_52, %c0_53, %c20_54] : memref<2x8x512xf32, #tpu.memory_space<vmem>>, vector<1x8x384xf32>
    %43 = vector.shape_cast %42 : vector<1x8x384xf32> to vector<8x384xf32>
    %c40_55 = arith.constant 40 : index
    %c384_56 = arith.constant 384 : index
    %44 = vector.load %arg8[%c40_55, %c384_56] : memref<72x768xf32, #tpu.memory_space<vmem>>, vector<8x384xf32>
    tpu.vector_store %arg8[%c40_55, %c384_56], %43 {strides = array<i32>} : memref<72x768xf32, #tpu.memory_space<vmem>>, vector<8x384xf32>,
    %c1_57 = arith.constant 1 : index
    %c0_58 = arith.constant 0 : index
    %c36_59 = arith.constant 36 : index
    %45 = vector.load %arg2[%c1_57, %c0_58, %c36_59] : memref<2x8x512xf32, #tpu.memory_space<vmem>>, vector<1x8x384xf32>
    %46 = vector.shape_cast %45 : vector<1x8x384xf32> to vector<8x384xf32>
    %c48_60 = arith.constant 48 : index
    %c384_61 = arith.constant 384 : index
    %47 = vector.load %arg8[%c48_60, %c384_61] : memref<72x768xf32, #tpu.memory_space<vmem>>, vector<8x384xf32>
    tpu.vector_store %arg8[%c48_60, %c384_61], %46 {strides = array<i32>} : memref<72x768xf32, #tpu.memory_space<vmem>>, vector<8x384xf32>,
    %c1_62 = arith.constant 1 : index
    %c0_63 = arith.constant 0 : index
    %c37_64 = arith.constant 37 : index
    %48 = vector.load %arg2[%c1_62, %c0_63, %c37_64] : memref<2x8x512xf32, #tpu.memory_space<vmem>>, vector<1x8x384xf32>
    %49 = vector.shape_cast %48 : vector<1x8x384xf32> to vector<8x384xf32>
    %c56_65 = arith.constant 56 : index
    %c384_66 = arith.constant 384 : index
    %50 = vector.load %arg8[%c56_65, %c384_66] : memref<72x768xf32, #tpu.memory_space<vmem>>, vector<8x384xf32>
    tpu.vector_store %arg8[%c56_65, %c384_66], %49 {strides = array<i32>} : memref<72x768xf32, #tpu.memory_space<vmem>>, vector<8x384xf32>,
    %c1_67 = arith.constant 1 : index
    %c0_68 = arith.constant 0 : index
    %c38_69 = arith.constant 38 : index
    %51 = vector.load %arg2[%c1_67, %c0_68, %c38_69] : memref<2x8x512xf32, #tpu.memory_space<vmem>>, vector<1x8x384xf32>
    %52 = vector.shape_cast %51 : vector<1x8x384xf32> to vector<8x384xf32>
    %c64_70 = arith.constant 64 : index
    %c384_71 = arith.constant 384 : index
    %53 = vector.load %arg8[%c64_70, %c384_71] : memref<72x768xf32, #tpu.memory_space<vmem>>, vector<8x384xf32>
    tpu.vector_store %arg8[%c64_70, %c384_71], %52 {strides = array<i32>} : memref<72x768xf32, #tpu.memory_space<vmem>>, vector<8x384xf32>,
    %c0_72 = arith.constant 0 : index
    %c0_73 = arith.constant 0 : index
    %54 = vector.load %arg3[%c0_72, %c0_73] : memref<24x72xf32, #tpu.memory_space<vmem>>, vector<24x72xf32>
    %c0_74 = arith.constant 0 : index
    %c0_75 = arith.constant 0 : index
    %55 = vector.load %arg8[%c0_74, %c0_75] : memref<72x768xf32, #tpu.memory_space<vmem>>, vector<72x768xf32>
    %cst = arith.constant dense<0.000000e+00> : vector<24x768xf32>
    %56 = tpu.matmul %54, %55, %cst {dimension_numbers = #tpu.dot_dimension_numbers<[1], [0], [0], [1], [0, 0, 1, 1], [], []>} : vector<24x72xf32>, vector<72x768xf32>, vector<24x768xf32> -> vector<24x768xf32>
    %c0_76 = arith.constant 0 : index
    %c0_77 = arith.constant 0 : index
    %57 = vector.load %arg4[%c0_76, %c0_77] : memref<24x1xf32, #tpu.memory_space<vmem>>, vector<24x1xf32>
    %58 = vector.broadcast %57 : vector<24x1xf32> to vector<24x768xf32>
    %59 = arith.addf %56, %58 : vector<24x768xf32>
    %cst_78 = arith.constant 0.000000e+00 : f32
    %60 = vector.broadcast %cst_78 : f32 to vector<24x768xf32>
    %61 = arith.maximumf %59, %60 : vector<24x768xf32>
    %c0_79 = arith.constant 0 : index
    %c0_80 = arith.constant 0 : index
    %62 = vector.load %arg5[%c0_79, %c0_80] : memref<8x24xf32, #tpu.memory_space<vmem>>, vector<8x24xf32>
    %cst_81 = arith.constant dense<0.000000e+00> : vector<8x768xf32>
    %63 = tpu.matmul %62, %61, %cst_81 {dimension_numbers = #tpu.dot_dimension_numbers<[1], [0], [0], [1], [0, 0, 1, 1], [], []>} : vector<8x24xf32>, vector<24x768xf32>, vector<8x768xf32> -> vector<8x768xf32>
    %c0_82 = arith.constant 0 : index
    %c0_83 = arith.constant 0 : index
    %64 = vector.load %arg6[%c0_82, %c0_83] : memref<8x1xf32, #tpu.memory_space<vmem>>, vector<8x1xf32>
    %65 = vector.broadcast %64 : vector<8x1xf32> to vector<8x768xf32>
    %66 = arith.addf %63, %65 : vector<8x768xf32>
    %cst_84 = arith.constant 0.000000e+00 : f32
    %67 = vector.broadcast %cst_84 : f32 to vector<8x768xf32>
    %68 = arith.maximumf %66, %67 : vector<8x768xf32>
    %69 = vector.extract_strided_slice %68 {offsets = [0, 0], sizes = [8, 384], strides = [1, 1]} : vector<8x768xf32> to vector<8x384xf32>
    %c0_85 = arith.constant 0 : index
    %c0_86 = arith.constant 0 : index
    %c0_87 = arith.constant 0 : index
    %70 = vector.load %arg7[%c0_85, %c0_86, %c0_87] : memref<2x8x384xf32, #tpu.memory_space<vmem>>, vector<1x8x384xf32>
    %71 = vector.shape_cast %70 : vector<1x8x384xf32> to vector<8x384xf32>
    %72 = vector.shape_cast %69 : vector<8x384xf32> to vector<1x8x384xf32>
    tpu.vector_store %arg7[%c0_85, %c0_86, %c0_87], %72 {strides = array<i32>} : memref<2x8x384xf32, #tpu.memory_space<vmem>>, vector<1x8x384xf32>,
    %73 = vector.extract_strided_slice %68 {offsets = [0, 384], sizes = [8, 384], strides = [1, 1]} : vector<8x768xf32> to vector<8x384xf32>
    %c1_88 = arith.constant 1 : index
    %c0_89 = arith.constant 0 : index
    %c0_90 = arith.constant 0 : index
    %74 = vector.load %arg7[%c1_88, %c0_89, %c0_90] : memref<2x8x384xf32, #tpu.memory_space<vmem>>, vector<1x8x384xf32>
    %75 = vector.shape_cast %74 : vector<1x8x384xf32> to vector<8x384xf32>
    %76 = vector.shape_cast %73 : vector<8x384xf32> to vector<1x8x384xf32>
    tpu.vector_store %arg7[%c1_88, %c0_89, %c0_90], %76 {strides = array<i32>} : memref<2x8x384xf32, #tpu.memory_space<vmem>>, vector<1x8x384xf32>,
    return
  }
  func.func @transform_0(%arg0: i32, %arg1: i32) -> (i32, i32, i32) {
    %c0_i32 = arith.constant 0 : i32
    %c0_i32_0 = arith.constant 0 : i32
    %c0_i32_1 = arith.constant 0 : i32
    return %arg0, %c0_i32, %c0_i32_0 : i32, i32, i32
  }
  func.func @transform_1(%arg0: i32, %arg1: i32) -> (i32, i32) {
    %c0_i32 = arith.constant 0 : i32
    %c0_i32_0 = arith.constant 0 : i32
    %c0_i32_1 = arith.constant 0 : i32
    return %c0_i32, %c0_i32_0 : i32, i32
  }
  func.func @transform_2(%arg0: i32, %arg1: i32) -> (i32, i32) {
    %c0_i32 = arith.constant 0 : i32
    %c0_i32_0 = arith.constant 0 : i32
    %c0_i32_1 = arith.constant 0 : i32
    return %c0_i32, %c0_i32_0 : i32, i32
  }
  func.func @transform_3(%arg0: i32, %arg1: i32) -> (i32, i32) {
    %c0_i32 = arith.constant 0 : i32
    %c0_i32_0 = arith.constant 0 : i32
    %c0_i32_1 = arith.constant 0 : i32
    return %c0_i32, %c0_i32_0 : i32, i32
  }
  func.func @transform_4(%arg0: i32, %arg1: i32) -> (i32, i32) {
    %c0_i32 = arith.constant 0 : i32
    %c0_i32_0 = arith.constant 0 : i32
    %c0_i32_1 = arith.constant 0 : i32
    return %c0_i32, %c0_i32_0 : i32, i32
  }
  func.func @transform_5(%arg0: i32, %arg1: i32) -> (i32, i32, i32) {
    %c0_i32 = arith.constant 0 : i32
    %c0_i32_0 = arith.constant 0 : i32
    return %arg0, %c0_i32, %arg1 : i32, i32, i32
  }
}

module attributes {stable_mosaic.version = 11 : i64} {
  func.func @kernel(%arg0: i32, %arg1: i32, %arg2: memref<2x8x512xf32, #tpu.memory_space<vmem>>, %arg3: memref<24x72xf32, #tpu.memory_space<vmem>>, %arg4: memref<24x1xf32, #tpu.memory_space<vmem>>, %arg5: memref<8x24xf32, #tpu.memory_space<vmem>>, %arg6: memref<8x1xf32, #tpu.memory_space<vmem>>, %arg7: memref<2x8x384xf32, #tpu.memory_space<vmem>>, %arg8: memref<72x768xf32, #tpu.memory_space<vmem>>) attributes {dimension_semantics = [#tpu.dimension_semantics<parallel>, #tpu.dimension_semantics<parallel>], iteration_bounds = array<i64: 1, 1>, scalar_prefetch = 0 : i64, scratch_operands = 1 : i64, tpu.core_type = #tpu.core_type<tc>, window_params = [{transform_indices = @transform_0, window_bounds = array<i64: 2, 8, 512>}, {pipeline_mode = #tpu.pipeline_mode<synchronous>, transform_indices = @transform_1, window_bounds = array<i64: 24, 72>}, {pipeline_mode = #tpu.pipeline_mode<synchronous>, transform_indices = @transform_2, window_bounds = array<i64: 24, 1>}, {pipeline_mode = #tpu.pipeline_mode<synchronous>, transform_indices = @transform_3, window_bounds = array<i64: 8, 24>}, {pipeline_mode = #tpu.pipeline_mode<synchronous>, transform_indices = @transform_4, window_bounds = array<i64: 8, 1>}, {transform_indices = @transform_5, window_bounds = array<i64: 2, 8, 384>}]} {
    %c0 = arith.constant 0 : index
    %c0_0 = arith.constant 0 : index
    %c0_1 = arith.constant 0 : index
    %0 = vector.load %arg2[%c0, %c0_0, %c0_1] : memref<2x8x512xf32, #tpu.memory_space<vmem>>, vector<1x8x384xf32>
    %1 = vector.shape_cast %0 : vector<1x8x384xf32> to vector<8x384xf32>
    %c0_2 = arith.constant 0 : index
    %c0_3 = arith.constant 0 : index
    %2 = vector.load %arg8[%c0_2, %c0_3] : memref<72x768xf32, #tpu.memory_space<vmem>>, vector<8x384xf32>
    tpu.vector_store %arg8[%c0_2, %c0_3], %1 {strides = array<i32>} : memref<72x768xf32, #tpu.memory_space<vmem>>, vector<8x384xf32>,
    %c0_4 = arith.constant 0 : index
    %c0_5 = arith.constant 0 : index
    %c1 = arith.constant 1 : index
    %3 = vector.load %arg2[%c0_4, %c0_5, %c1] : memref<2x8x512xf32, #tpu.memory_space<vmem>>, vector<1x8x384xf32>
    %4 = vector.shape_cast %3 : vector<1x8x384xf32> to vector<8x384xf32>
    %c8 = arith.constant 8 : index
    %c0_6 = arith.constant 0 : index
    %5 = vector.load %arg8[%c8, %c0_6] : memref<72x768xf32, #tpu.memory_space<vmem>>, vector<8x384xf32>
    tpu.vector_store %arg8[%c8, %c0_6], %4 {strides = array<i32>} : memref<72x768xf32, #tpu.memory_space<vmem>>, vector<8x384xf32>,
    %c0_7 = arith.constant 0 : index
    %c0_8 = arith.constant 0 : index
    %c2 = arith.constant 2 : index
    %6 = vector.load %arg2[%c0_7, %c0_8, %c2] : memref<2x8x512xf32, #tpu.memory_space<vmem>>, vector<1x8x384xf32>
    %7 = vector.shape_cast %6 : vector<1x8x384xf32> to vector<8x384xf32>
    %c16 = arith.constant 16 : index
    %c0_9 = arith.constant 0 : index
    %8 = vector.load %arg8[%c16, %c0_9] : memref<72x768xf32, #tpu.memory_space<vmem>>, vector<8x384xf32>
    tpu.vector_store %arg8[%c16, %c0_9], %7 {strides = array<i32>} : memref<72x768xf32, #tpu.memory_space<vmem>>, vector<8x384xf32>,
    %c0_10 = arith.constant 0 : index
    %c0_11 = arith.constant 0 : index
    %c18 = arith.constant 18 : index
    %9 = vector.load %arg2[%c0_10, %c0_11, %c18] : memref<2x8x512xf32, #tpu.memory_space<vmem>>, vector<1x8x384xf32>
    %10 = vector.shape_cast %9 : vector<1x8x384xf32> to vector<8x384xf32>
    %c24 = arith.constant 24 : index
    %c0_12 = arith.constant 0 : index
    %11 = vector.load %arg8[%c24, %c0_12] : memref<72x768xf32, #tpu.memory_space<vmem>>, vector<8x384xf32>
    tpu.vector_store %arg8[%c24, %c0_12], %10 {strides = array<i32>} : memref<72x768xf32, #tpu.memory_space<vmem>>, vector<8x384xf32>,
    %c0_13 = arith.constant 0 : index
    %c0_14 = arith.constant 0 : index
    %c19 = arith.constant 19 : index
    %12 = vector.load %arg2[%c0_13, %c0_14, %c19] : memref<2x8x512xf32, #tpu.memory_space<vmem>>, vector<1x8x384xf32>
    %13 = vector.shape_cast %12 : vector<1x8x384xf32> to vector<8x384xf32>
    %c32 = arith.constant 32 : index
    %c0_15 = arith.constant 0 : index
    %14 = vector.load %arg8[%c32, %c0_15] : memref<72x768xf32, #tpu.memory_space<vmem>>, vector<8x384xf32>
    tpu.vector_store %arg8[%c32, %c0_15], %13 {strides = array<i32>} : memref<72x768xf32, #tpu.memory_space<vmem>>, vector<8x384xf32>,
    %c0_16 = arith.constant 0 : index
    %c0_17 = arith.constant 0 : index
    %c20 = arith.constant 20 : index
    %15 = vector.load %arg2[%c0_16, %c0_17, %c20] : memref<2x8x512xf32, #tpu.memory_space<vmem>>, vector<1x8x384xf32>
    %16 = vector.shape_cast %15 : vector<1x8x384xf32> to vector<8x384xf32>
    %c40 = arith.constant 40 : index
    %c0_18 = arith.constant 0 : index
    %17 = vector.load %arg8[%c40, %c0_18] : memref<72x768xf32, #tpu.memory_space<vmem>>, vector<8x384xf32>
    tpu.vector_store %arg8[%c40, %c0_18], %16 {strides = array<i32>} : memref<72x768xf32, #tpu.memory_space<vmem>>, vector<8x384xf32>,
    %c0_19 = arith.constant 0 : index
    %c0_20 = arith.constant 0 : index
    %c36 = arith.constant 36 : index
    %18 = vector.load %arg2[%c0_19, %c0_20, %c36] : memref<2x8x512xf32, #tpu.memory_space<vmem>>, vector<1x8x384xf32>
    %19 = vector.shape_cast %18 : vector<1x8x384xf32> to vector<8x384xf32>
    %c48 = arith.constant 48 : index
    %c0_21 = arith.constant 0 : index
    %20 = vector.load %arg8[%c48, %c0_21] : memref<72x768xf32, #tpu.memory_space<vmem>>, vector<8x384xf32>
    tpu.vector_store %arg8[%c48, %c0_21], %19 {strides = array<i32>} : memref<72x768xf32, #tpu.memory_space<vmem>>, vector<8x384xf32>,
    %c0_22 = arith.constant 0 : index
    %c0_23 = arith.constant 0 : index
    %c37 = arith.constant 37 : index
    %21 = vector.load %arg2[%c0_22, %c0_23, %c37] : memref<2x8x512xf32, #tpu.memory_space<vmem>>, vector<1x8x384xf32>
    %22 = vector.shape_cast %21 : vector<1x8x384xf32> to vector<8x384xf32>
    %c56 = arith.constant 56 : index
    %c0_24 = arith.constant 0 : index
    %23 = vector.load %arg8[%c56, %c0_24] : memref<72x768xf32, #tpu.memory_space<vmem>>, vector<8x384xf32>
    tpu.vector_store %arg8[%c56, %c0_24], %22 {strides = array<i32>} : memref<72x768xf32, #tpu.memory_space<vmem>>, vector<8x384xf32>,
    %c0_25 = arith.constant 0 : index
    %c0_26 = arith.constant 0 : index
    %c38 = arith.constant 38 : index
    %24 = vector.load %arg2[%c0_25, %c0_26, %c38] : memref<2x8x512xf32, #tpu.memory_space<vmem>>, vector<1x8x384xf32>
    %25 = vector.shape_cast %24 : vector<1x8x384xf32> to vector<8x384xf32>
    %c64 = arith.constant 64 : index
    %c0_27 = arith.constant 0 : index
    %26 = vector.load %arg8[%c64, %c0_27] : memref<72x768xf32, #tpu.memory_space<vmem>>, vector<8x384xf32>
    tpu.vector_store %arg8[%c64, %c0_27], %25 {strides = array<i32>} : memref<72x768xf32, #tpu.memory_space<vmem>>, vector<8x384xf32>,
    %c1_28 = arith.constant 1 : index
    %c0_29 = arith.constant 0 : index
    %c0_30 = arith.constant 0 : index
    %27 = vector.load %arg2[%c1_28, %c0_29, %c0_30] : memref<2x8x512xf32, #tpu.memory_space<vmem>>, vector<1x8x384xf32>
    %28 = vector.shape_cast %27 : vector<1x8x384xf32> to vector<8x384xf32>
    %c0_31 = arith.constant 0 : index
    %c384 = arith.constant 384 : index
    %29 = vector.load %arg8[%c0_31, %c384] : memref<72x768xf32, #tpu.memory_space<vmem>>, vector<8x384xf32>
    tpu.vector_store %arg8[%c0_31, %c384], %28 {strides = array<i32>} : memref<72x768xf32, #tpu.memory_space<vmem>>, vector<8x384xf32>,
    %c1_32 = arith.constant 1 : index
    %c0_33 = arith.constant 0 : index
    %c1_34 = arith.constant 1 : index
    %30 = vector.load %arg2[%c1_32, %c0_33, %c1_34] : memref<2x8x512xf32, #tpu.memory_space<vmem>>, vector<1x8x384xf32>
    %31 = vector.shape_cast %30 : vector<1x8x384xf32> to vector<8x384xf32>
    %c8_35 = arith.constant 8 : index
    %c384_36 = arith.constant 384 : index
    %32 = vector.load %arg8[%c8_35, %c384_36] : memref<72x768xf32, #tpu.memory_space<vmem>>, vector<8x384xf32>
    tpu.vector_store %arg8[%c8_35, %c384_36], %31 {strides = array<i32>} : memref<72x768xf32, #tpu.memory_space<vmem>>, vector<8x384xf32>,
    %c1_37 = arith.constant 1 : index
    %c0_38 = arith.constant 0 : index
    %c2_39 = arith.constant 2 : index
    %33 = vector.load %arg2[%c1_37, %c0_38, %c2_39] : memref<2x8x512xf32, #tpu.memory_space<vmem>>, vector<1x8x384xf32>
    %34 = vector.shape_cast %33 : vector<1x8x384xf32> to vector<8x384xf32>
    %c16_40 = arith.constant 16 : index
    %c384_41 = arith.constant 384 : index
    %35 = vector.load %arg8[%c16_40, %c384_41] : memref<72x768xf32, #tpu.memory_space<vmem>>, vector<8x384xf32>
    tpu.vector_store %arg8[%c16_40, %c384_41], %34 {strides = array<i32>} : memref<72x768xf32, #tpu.memory_space<vmem>>, vector<8x384xf32>,
    %c1_42 = arith.constant 1 : index
    %c0_43 = arith.constant 0 : index
    %c18_44 = arith.constant 18 : index
    %36 = vector.load %arg2[%c1_42, %c0_43, %c18_44] : memref<2x8x512xf32, #tpu.memory_space<vmem>>, vector<1x8x384xf32>
    %37 = vector.shape_cast %36 : vector<1x8x384xf32> to vector<8x384xf32>
    %c24_45 = arith.constant 24 : index
    %c384_46 = arith.constant 384 : index
    %38 = vector.load %arg8[%c24_45, %c384_46] : memref<72x768xf32, #tpu.memory_space<vmem>>, vector<8x384xf32>
    tpu.vector_store %arg8[%c24_45, %c384_46], %37 {strides = array<i32>} : memref<72x768xf32, #tpu.memory_space<vmem>>, vector<8x384xf32>,
    %c1_47 = arith.constant 1 : index
    %c0_48 = arith.constant 0 : index
    %c19_49 = arith.constant 19 : index
    %39 = vector.load %arg2[%c1_47, %c0_48, %c19_49] : memref<2x8x512xf32, #tpu.memory_space<vmem>>, vector<1x8x384xf32>
    %40 = vector.shape_cast %39 : vector<1x8x384xf32> to vector<8x384xf32>
    %c32_50 = arith.constant 32 : index
    %c384_51 = arith.constant 384 : index
    %41 = vector.load %arg8[%c32_50, %c384_51] : memref<72x768xf32, #tpu.memory_space<vmem>>, vector<8x384xf32>
    tpu.vector_store %arg8[%c32_50, %c384_51], %40 {strides = array<i32>} : memref<72x768xf32, #tpu.memory_space<vmem>>, vector<8x384xf32>,
    %c1_52 = arith.constant 1 : index
    %c0_53 = arith.constant 0 : index
    %c20_54 = arith.constant 20 : index
    %42 = vector.load %arg2[%c1_52, %c0_53, %c20_54] : memref<2x8x512xf32, #tpu.memory_space<vmem>>, vector<1x8x384xf32>
    %43 = vector.shape_cast %42 : vector<1x8x384xf32> to vector<8x384xf32>
    %c40_55 = arith.constant 40 : index
    %c384_56 = arith.constant 384 : index
    %44 = vector.load %arg8[%c40_55, %c384_56] : memref<72x768xf32, #tpu.memory_space<vmem>>, vector<8x384xf32>
    tpu.vector_store %arg8[%c40_55, %c384_56], %43 {strides = array<i32>} : memref<72x768xf32, #tpu.memory_space<vmem>>, vector<8x384xf32>,
    %c1_57 = arith.constant 1 : index
    %c0_58 = arith.constant 0 : index
    %c36_59 = arith.constant 36 : index
    %45 = vector.load %arg2[%c1_57, %c0_58, %c36_59] : memref<2x8x512xf32, #tpu.memory_space<vmem>>, vector<1x8x384xf32>
    %46 = vector.shape_cast %45 : vector<1x8x384xf32> to vector<8x384xf32>
    %c48_60 = arith.constant 48 : index
    %c384_61 = arith.constant 384 : index
    %47 = vector.load %arg8[%c48_60, %c384_61] : memref<72x768xf32, #tpu.memory_space<vmem>>, vector<8x384xf32>
    tpu.vector_store %arg8[%c48_60, %c384_61], %46 {strides = array<i32>} : memref<72x768xf32, #tpu.memory_space<vmem>>, vector<8x384xf32>,
    %c1_62 = arith.constant 1 : index
    %c0_63 = arith.constant 0 : index
    %c37_64 = arith.constant 37 : index
    %48 = vector.load %arg2[%c1_62, %c0_63, %c37_64] : memref<2x8x512xf32, #tpu.memory_space<vmem>>, vector<1x8x384xf32>
    %49 = vector.shape_cast %48 : vector<1x8x384xf32> to vector<8x384xf32>
    %c56_65 = arith.constant 56 : index
    %c384_66 = arith.constant 384 : index
    %50 = vector.load %arg8[%c56_65, %c384_66] : memref<72x768xf32, #tpu.memory_space<vmem>>, vector<8x384xf32>
    tpu.vector_store %arg8[%c56_65, %c384_66], %49 {strides = array<i32>} : memref<72x768xf32, #tpu.memory_space<vmem>>, vector<8x384xf32>,
    %c1_67 = arith.constant 1 : index
    %c0_68 = arith.constant 0 : index
    %c38_69 = arith.constant 38 : index
    %51 = vector.load %arg2[%c1_67, %c0_68, %c38_69] : memref<2x8x512xf32, #tpu.memory_space<vmem>>, vector<1x8x384xf32>
    %52 = vector.shape_cast %51 : vector<1x8x384xf32> to vector<8x384xf32>
    %c64_70 = arith.constant 64 : index
    %c384_71 = arith.constant 384 : index
    %53 = vector.load %arg8[%c64_70, %c384_71] : memref<72x768xf32, #tpu.memory_space<vmem>>, vector<8x384xf32>
    tpu.vector_store %arg8[%c64_70, %c384_71], %52 {strides = array<i32>} : memref<72x768xf32, #tpu.memory_space<vmem>>, vector<8x384xf32>,
    %c0_72 = arith.constant 0 : index
    %c0_73 = arith.constant 0 : index
    %54 = vector.load %arg3[%c0_72, %c0_73] : memref<24x72xf32, #tpu.memory_space<vmem>>, vector<24x72xf32>
    %c0_74 = arith.constant 0 : index
    %c0_75 = arith.constant 0 : index
    %55 = vector.load %arg8[%c0_74, %c0_75] : memref<72x768xf32, #tpu.memory_space<vmem>>, vector<72x768xf32>
    %cst = arith.constant dense<0.000000e+00> : vector<24x768xf32>
    %56 = tpu.matmul %54, %55, %cst {dimension_numbers = #tpu.dot_dimension_numbers<[1], [0], [0], [1], [0, 0, 1, 1], [], []>} : vector<24x72xf32>, vector<72x768xf32>, vector<24x768xf32> -> vector<24x768xf32>
    %c0_76 = arith.constant 0 : index
    %c0_77 = arith.constant 0 : index
    %57 = vector.load %arg4[%c0_76, %c0_77] : memref<24x1xf32, #tpu.memory_space<vmem>>, vector<24x1xf32>
    %58 = vector.broadcast %57 : vector<24x1xf32> to vector<24x768xf32>
    %59 = arith.addf %56, %58 : vector<24x768xf32>
    %cst_78 = arith.constant 0.000000e+00 : f32
    %60 = vector.broadcast %cst_78 : f32 to vector<24x768xf32>
    %61 = arith.maximumf %59, %60 : vector<24x768xf32>
    %c0_79 = arith.constant 0 : index
    %c0_80 = arith.constant 0 : index
    %62 = vector.load %arg5[%c0_79, %c0_80] : memref<8x24xf32, #tpu.memory_space<vmem>>, vector<8x24xf32>
    %cst_81 = arith.constant dense<0.000000e+00> : vector<8x768xf32>
    %63 = tpu.matmul %62, %61, %cst_81 {dimension_numbers = #tpu.dot_dimension_numbers<[1], [0], [0], [1], [0, 0, 1, 1], [], []>} : vector<8x24xf32>, vector<24x768xf32>, vector<8x768xf32> -> vector<8x768xf32>
    %c0_82 = arith.constant 0 : index
    %c0_83 = arith.constant 0 : index
    %64 = vector.load %arg6[%c0_82, %c0_83] : memref<8x1xf32, #tpu.memory_space<vmem>>, vector<8x1xf32>
    %65 = vector.broadcast %64 : vector<8x1xf32> to vector<8x768xf32>
    %66 = arith.addf %63, %65 : vector<8x768xf32>
    %cst_84 = arith.constant 0.000000e+00 : f32
    %67 = vector.broadcast %cst_84 : f32 to vector<8x768xf32>
    %68 = arith.maximumf %66, %67 : vector<8x768xf32>
    %69 = vector.extract_strided_slice %68 {offsets = [0, 0], sizes = [8, 384], strides = [1, 1]} : vector<8x768xf32> to vector<8x384xf32>
    %c0_85 = arith.constant 0 : index
    %c0_86 = arith.constant 0 : index
    %c0_87 = arith.constant 0 : index
    %70 = vector.load %arg7[%c0_85, %c0_86, %c0_87] : memref<2x8x384xf32, #tpu.memory_space<vmem>>, vector<1x8x384xf32>
    %71 = vector.shape_cast %70 : vector<1x8x384xf32> to vector<8x384xf32>
    %72 = vector.shape_cast %69 : vector<8x384xf32> to vector<1x8x384xf32>
    tpu.vector_store %arg7[%c0_85, %c0_86, %c0_87], %72 {strides = array<i32>} : memref<2x8x384xf32, #tpu.memory_space<vmem>>, vector<1x8x384xf32>,
    %73 = vector.extract_strided_slice %68 {offsets = [0, 384], sizes = [8, 384], strides = [1, 1]} : vector<8x768xf32> to vector<8x384xf32>
    %c1_88 = arith.constant 1 : index
    %c0_89 = arith.constant 0 : index
    %c0_90 = arith.constant 0 : index
    %74 = vector.load %arg7[%c1_88, %c0_89, %c0_90] : memref<2x8x384xf32, #tpu.memory_space<vmem>>, vector<1x8x384xf32>
    %75 = vector.shape_cast %74 : vector<1x8x384xf32> to vector<8x384xf32>
    %76 = vector.shape_cast %73 : vector<8x384xf32> to vector<1x8x384xf32>
    tpu.vector_store %arg7[%c1_88, %c0_89, %c0_90], %76 {strides = array<i32>} : memref<2x8x384xf32, #tpu.memory_space<vmem>>, vector<1x8x384xf32>,
    return
  }
  func.func @transform_0(%arg0: i32, %arg1: i32) -> (i32, i32, i32) {
    %c0_i32 = arith.constant 0 : i32
    %c0_i32_0 = arith.constant 0 : i32
    %c0_i32_1 = arith.constant 0 : i32
    return %arg0, %c0_i32, %c0_i32_0 : i32, i32, i32
  }
  func.func @transform_1(%arg0: i32, %arg1: i32) -> (i32, i32) {
    %c0_i32 = arith.constant 0 : i32
    %c0_i32_0 = arith.constant 0 : i32
    %c0_i32_1 = arith.constant 0 : i32
    return %c0_i32, %c0_i32_0 : i32, i32
  }
  func.func @transform_2(%arg0: i32, %arg1: i32) -> (i32, i32) {
    %c0_i32 = arith.constant 0 : i32
    %c0_i32_0 = arith.constant 0 : i32
    %c0_i32_1 = arith.constant 0 : i32
    return %c0_i32, %c0_i32_0 : i32, i32
  }
  func.func @transform_3(%arg0: i32, %arg1: i32) -> (i32, i32) {
    %c0_i32 = arith.constant 0 : i32
    %c0_i32_0 = arith.constant 0 : i32
    %c0_i32_1 = arith.constant 0 : i32
    return %c0_i32, %c0_i32_0 : i32, i32
  }
  func.func @transform_4(%arg0: i32, %arg1: i32) -> (i32, i32) {
    %c0_i32 = arith.constant 0 : i32
    %c0_i32_0 = arith.constant 0 : i32
    %c0_i32_1 = arith.constant 0 : i32
    return %c0_i32, %c0_i32_0 : i32, i32
  }
  func.func @transform_5(%arg0: i32, %arg1: i32) -> (i32, i32, i32) {
    %c0_i32 = arith.constant 0 : i32
    %c0_i32_0 = arith.constant 0 : i32
    return %arg0, %c0_i32, %arg1 : i32, i32, i32
  }
}

</mosaic_0001>

<llo_original>
// kernel: tpu_custom_call.1
$region0: #{tpu_custom_call.1}
  #allocation0 [shape = 'u32[]', space=smem, size = 0x4, offset = 0x4, fixed_abs, tag = 'smem constant byte address 0x4 - core index']
  #allocation1 [shape = 'u32[72,128]{1,0:T(1,128)}', space=vmem, size = 0x9000, scoped, tag = 'internal scratch']
  #allocation2 [shape = 'f32[72,768]{1,0:T(8,128)}', space=vmem, size = 0x36000, scoped, tag = 'scratch operand']
  %s0 = inlined_call_operand.hbm [shape: f32[2,8,512], index: 0, kind: input, shape index: {}]
  %s1 = inlined_call_operand.vmem [shape: f32[24,72], index: 1, kind: input, shape index: {}]
  %s2 = inlined_call_operand.vmem [shape: f32[24,1], index: 2, kind: input, shape index: {}]
  %s3 = inlined_call_operand.vmem [shape: f32[8,24], index: 3, kind: input, shape index: {}]
  %s4 = inlined_call_operand.vmem [shape: f32[8,1], index: 4, kind: input, shape index: {}]
  %s5 = inlined_call_operand.hbm [shape: f32[2,8,384], index: 5, kind: output, shape index: {}]
  %s6 = sld [smem:[#allocation0]]
  $region34: #{tpu_custom_call.1} parent=0
    _
  %s8 = ssub.s32 1, %s6
  %s9 = scalar_select 0, %s8, %s6
  $region1: #{tpu_custom_call.1} parent=0
    #allocation3 [shape = 'u8[32768]{0}', space=vmem, size = 0x8000, scoped, tag = 'input window, operand 0, single buffered']
    #allocation4 [shape = 's32[1]{0}', space=sflag, size = 0x4, scoped, tag = 'scoped memory for tpu_custom_call.1']
    #allocation5 [shape = 's32[1]{0}', space=sflag, size = 0x4, scoped, tag = 'scoped memory for tpu_custom_call.1']
    #allocation6 [shape = 'u8[24576]{0}', space=vmem, size = 0x6000, scoped, tag = 'output window, operand 0, single buffered']
    %10 = vsyncpa [#allocation4], 0
    %11 = vsyncpa [#allocation5], 0
    // Predicated region
    $region2: #{tpu_custom_call.1} parent=1 // pred_check
      _
    $region3: #{tpu_custom_call.1} parent=1 // pred_check_branch
      %13 = sbr.rel (0) target = $region5
    $region4: #{tpu_custom_call.1} parent=1 // pred_region
      %15 = vsyncadd [#allocation4], 0
      %s16 = sshll.u32 %s0, 4
      %s17 = int_to_ptr.hbm [resolvable:$true] %s16
      %s18 = sshll.u32 [#allocation3], 4
      %s19 = int_to_ptr.vmem [resolvable:$true] %s18
      %24 = dma.hbm_to_vmem [thread:$0]  %s17, 1024, %s19, [#allocation4], 512, 512, 32
    $region5: #{tpu_custom_call.1} parent=1 // pred_fallthru
      _
    // Predicated region
    $region6: #{tpu_custom_call.1} parent=1 // pred_check
      _
    $region7: #{tpu_custom_call.1} parent=1 // pred_check_branch
      %26 = sbr.rel (0) target = $region9
    $region8: #{tpu_custom_call.1} parent=1 // pred_region
      _
    $region9: #{tpu_custom_call.1} parent=1 // pred_fallthru
      _
    // Predicated region
    $region10: #{tpu_custom_call.1} parent=1 // pred_check
      _
    $region11: #{tpu_custom_call.1} parent=1 // pred_check_branch
      %28 = sbr.rel (0) target = $region13
    $region12: #{tpu_custom_call.1} parent=1 // pred_region
      _
    $region13: #{tpu_custom_call.1} parent=1 // pred_fallthru
      _
    // Predicated region
    $region14: #{tpu_custom_call.1} parent=1 // pred_check
      _
    $region15: #{tpu_custom_call.1} parent=1 // pred_check_branch
      %30 = sbr.rel (0) target = $region17
    $region16: #{tpu_custom_call.1} parent=1 // pred_region
      _
    $region17: #{tpu_custom_call.1} parent=1 // pred_fallthru
      _
    // Predicated region
    $region18: #{tpu_custom_call.1} parent=1 // pred_check
      _
    $region19: #{tpu_custom_call.1} parent=1 // pred_check_branch
      %32 = sbr.rel (0) target = $region21
    $region20: #{tpu_custom_call.1} parent=1 // pred_region
      _
    $region21: #{tpu_custom_call.1} parent=1 // pred_fallthru
      _
    // Predicated region
    $region22: #{tpu_custom_call.1} parent=1 // pred_check
      _
    $region23: #{tpu_custom_call.1} parent=1 // pred_check_branch
      %34 = sbr.rel (0) target = $region25
    $region24: #{tpu_custom_call.1} parent=1 // pred_region
      %36 = dma.done [#allocation4], 1024
    $region25: #{tpu_custom_call.1} parent=1 // pred_fallthru
      _
    %v37 = vld [vmem:[#allocation3] sm:$0xff]
    %v38 = vld [vmem:[#allocation3 + $0x8] sm:$0xff]
    %v39 = vld [vmem:[#allocation3 + $0x10] sm:$0xff]
    %40 = vst [vmem:[#allocation2] sm:$0xff] %v37
    %41 = vst [vmem:[#allocation2 + $0x8] sm:$0xff] %v38
    %42 = vst [vmem:[#allocation2 + $0x10] sm:$0xff] %v39
    %v43 = vld [vmem:[#allocation3] sm:$0xff]
    %v44 = vld [vmem:[#allocation3 + $0x8] sm:$0xff]
    %v45 = vld [vmem:[#allocation3 + $0x10] sm:$0xff]
    %v46 = vld [vmem:[#allocation3 + $0x18] sm:$0xff]
    %51 = vrot.lane.b32.xlu0 %v43, 127
    %v52 = vpop.permute.xlu0 %51
    %53 = vrot.lane.b32.xlu0 %v44, 127
    %v54 = vpop.permute.xlu0 %53
    %55 = vrot.lane.b32.xlu0 %v45, 127
    %v56 = vpop.permute.xlu0 %55
    %57 = vrot.lane.b32.xlu0 %v46, 127
    %v58 = vpop.permute.xlu0 %57
    %vm59 = vcmask 1039360
    %v60 = vsel %vm59, %v52, %v54
    %v61 = vsel %vm59, %v54, %v56
    %v62 = vsel %vm59, %v56, %v58
    %66 = vst [vmem:[#allocation2 + $0x30] sm:$0xff] %v60
    %67 = vst [vmem:[#allocation2 + $0x38] sm:$0xff] %v61
    %68 = vst [vmem:[#allocation2 + $0x40] sm:$0xff] %v62
    %v69 = vld [vmem:[#allocation3] sm:$0xff]
    %v70 = vld [vmem:[#allocation3 + $0x8] sm:$0xff]
    %v71 = vld [vmem:[#allocation3 + $0x10] sm:$0xff]
    %v72 = vld [vmem:[#allocation3 + $0x18] sm:$0xff]
    %77 = vrot.lane.b32.xlu0 %v69, 126
    %v78 = vpop.permute.xlu0 %77
    %79 = vrot.lane.b32.xlu0 %v70, 126
    %v80 = vpop.permute.xlu0 %79
    %81 = vrot.lane.b32.xlu0 %v71, 126
    %v82 = vpop.permute.xlu0 %81
    %83 = vrot.lane.b32.xlu0 %v72, 126
    %v84 = vpop.permute.xlu0 %83
    %vm85 = vcmask 1031168
    %v86 = vsel %vm85, %v78, %v80
    %v87 = vsel %vm85, %v80, %v82
    %v88 = vsel %vm85, %v82, %v84
    %92 = vst [vmem:[#allocation2 + $0x60] sm:$0xff] %v86
    %93 = vst [vmem:[#allocation2 + $0x68] sm:$0xff] %v87
    %94 = vst [vmem:[#allocation2 + $0x70] sm:$0xff] %v88
    %v95 = vld [vmem:[#allocation3] sm:$0xff]
    %v96 = vld [vmem:[#allocation3 + $0x8] sm:$0xff]
    %v97 = vld [vmem:[#allocation3 + $0x10] sm:$0xff]
    %v98 = vld [vmem:[#allocation3 + $0x18] sm:$0xff]
    %103 = vrot.lane.b32.xlu0 %v95, 110
    %v104 = vpop.permute.xlu0 %103
    %105 = vrot.lane.b32.xlu0 %v96, 110
    %v106 = vpop.permute.xlu0 %105
    %107 = vrot.lane.b32.xlu0 %v97, 110
    %v108 = vpop.permute.xlu0 %107
    %109 = vrot.lane.b32.xlu0 %v98, 110
    %v110 = vpop.permute.xlu0 %109
    %vm111 = vcmask 900096
    %v112 = vsel %vm111, %v104, %v106
    %v113 = vsel %vm111, %v106, %v108
    %v114 = vsel %vm111, %v108, %v110
    %118 = vst [vmem:[#allocation2 + $0x90] sm:$0xff] %v112
    %119 = vst [vmem:[#allocation2 + $0x98] sm:$0xff] %v113
    %120 = vst [vmem:[#allocation2 + $0xa0] sm:$0xff] %v114
    %v121 = vld [vmem:[#allocation3] sm:$0xff]
    %v122 = vld [vmem:[#allocation3 + $0x8] sm:$0xff]
    %v123 = vld [vmem:[#allocation3 + $0x10] sm:$0xff]
    %v124 = vld [vmem:[#allocation3 + $0x18] sm:$0xff]
    %129 = vrot.lane.b32.xlu0 %v121, 109
    %v130 = vpop.permute.xlu0 %129
    %131 = vrot.lane.b32.xlu0 %v122, 109
    %v132 = vpop.permute.xlu0 %131
    %133 = vrot.lane.b32.xlu0 %v123, 109
    %v134 = vpop.permute.xlu0 %133
    %135 = vrot.lane.b32.xlu0 %v124, 109
    %v136 = vpop.permute.xlu0 %135
    %vm137 = vcmask 891904
    %v138 = vsel %vm137, %v130, %v132
    %v139 = vsel %vm137, %v132, %v134
    %v140 = vsel %vm137, %v134, %v136
    %144 = vst [vmem:[#allocation2 + $0xc0] sm:$0xff] %v138
    %145 = vst [vmem:[#allocation2 + $0xc8] sm:$0xff] %v139
    %146 = vst [vmem:[#allocation2 + $0xd0] sm:$0xff] %v140
    %v147 = vld [vmem:[#allocation3] sm:$0xff]
    %v148 = vld [vmem:[#allocation3 + $0x8] sm:$0xff]
    %v149 = vld [vmem:[#allocation3 + $0x10] sm:$0xff]
    %v150 = vld [vmem:[#allocation3 + $0x18] sm:$0xff]
    %155 = vrot.lane.b32.xlu0 %v147, 108
    %v156 = vpop.permute.xlu0 %155
    %157 = vrot.lane.b32.xlu0 %v148, 108
    %v158 = vpop.permute.xlu0 %157
    %159 = vrot.lane.b32.xlu0 %v149, 108
    %v160 = vpop.permute.xlu0 %159
    %161 = vrot.lane.b32.xlu0 %v150, 108
    %v162 = vpop.permute.xlu0 %161
    %vm163 = vcmask 883712
    %v164 = vsel %vm163, %v156, %v158
    %v165 = vsel %vm163, %v158, %v160
    %v166 = vsel %vm163, %v160, %v162
    %170 = vst [vmem:[#allocation2 + $0xf0] sm:$0xff] %v164
    %171 = vst [vmem:[#allocation2 + $0xf8] sm:$0xff] %v165
    %172 = vst [vmem:[#allocation2 + $0x100] sm:$0xff] %v166
    %v173 = vld [vmem:[#allocation3] sm:$0xff]
    %v174 = vld [vmem:[#allocation3 + $0x8] sm:$0xff]
    %v175 = vld [vmem:[#allocation3 + $0x10] sm:$0xff]
    %v176 = vld [vmem:[#allocation3 + $0x18] sm:$0xff]
    %181 = vrot.lane.b32.xlu0 %v173, 92
    %v182 = vpop.permute.xlu0 %181
    %183 = vrot.lane.b32.xlu0 %v174, 92
    %v184 = vpop.permute.xlu0 %183
    %185 = vrot.lane.b32.xlu0 %v175, 92
    %v186 = vpop.permute.xlu0 %185
    %187 = vrot.lane.b32.xlu0 %v176, 92
    %v188 = vpop.permute.xlu0 %187
    %vm189 = vcmask 752640
    %v190 = vsel %vm189, %v182, %v184
    %v191 = vsel %vm189, %v184, %v186
    %v192 = vsel %vm189, %v186, %v188
    %196 = vst [vmem:[#allocation2 + $0x120] sm:$0xff] %v190
    %197 = vst [vmem:[#allocation2 + $0x128] sm:$0xff] %v191
    %198 = vst [vmem:[#allocation2 + $0x130] sm:$0xff] %v192
    %v199 = vld [vmem:[#allocation3] sm:$0xff]
    %v200 = vld [vmem:[#allocation3 + $0x8] sm:$0xff]
    %v201 = vld [vmem:[#allocation3 + $0x10] sm:$0xff]
    %v202 = vld [vmem:[#allocation3 + $0x18] sm:$0xff]
    %207 = vrot.lane.b32.xlu0 %v199, 91
    %v208 = vpop.permute.xlu0 %207
    %209 = vrot.lane.b32.xlu0 %v200, 91
    %v210 = vpop.permute.xlu0 %209
    %211 = vrot.lane.b32.xlu0 %v201, 91
    %v212 = vpop.permute.xlu0 %211
    %213 = vrot.lane.b32.xlu0 %v202, 91
    %v214 = vpop.permute.xlu0 %213
    %vm215 = vcmask 744448
    %v216 = vsel %vm215, %v208, %v210
    %v217 = vsel %vm215, %v210, %v212
    %v218 = vsel %vm215, %v212, %v214
    %222 = vst [vmem:[#allocation2 + $0x150] sm:$0xff] %v216
    %223 = vst [vmem:[#allocation2 + $0x158] sm:$0xff] %v217
    %224 = vst [vmem:[#allocation2 + $0x160] sm:$0xff] %v218
    %v225 = vld [vmem:[#allocation3] sm:$0xff]
    %v226 = vld [vmem:[#allocation3 + $0x8] sm:$0xff]
    %v227 = vld [vmem:[#allocation3 + $0x10] sm:$0xff]
    %v228 = vld [vmem:[#allocation3 + $0x18] sm:$0xff]
    %233 = vrot.lane.b32.xlu0 %v225, 90
    %v234 = vpop.permute.xlu0 %233
    %235 = vrot.lane.b32.xlu0 %v226, 90
    %v236 = vpop.permute.xlu0 %235
    %237 = vrot.lane.b32.xlu0 %v227, 90
    %v238 = vpop.permute.xlu0 %237
    %239 = vrot.lane.b32.xlu0 %v228, 90
    %v240 = vpop.permute.xlu0 %239
    %vm241 = vcmask 736256
    %v242 = vsel %vm241, %v234, %v236
    %v243 = vsel %vm241, %v236, %v238
    %v244 = vsel %vm241, %v238, %v240
    %248 = vst [vmem:[#allocation2 + $0x180] sm:$0xff] %v242
    %249 = vst [vmem:[#allocation2 + $0x188] sm:$0xff] %v243
    %250 = vst [vmem:[#allocation2 + $0x190] sm:$0xff] %v244
    %s251 = scalar_lea.vmem [#allocation3], 32
    %v252 = vld [vmem:[%s251] sm:$0xff]
    %v253 = vld [vmem:[%s251 + $0x8] sm:$0xff]
    %v254 = vld [vmem:[%s251 + $0x10] sm:$0xff]
    %255 = vst [vmem:[#allocation2 + $0x18] sm:$0xff] %v252
    %256 = vst [vmem:[#allocation2 + $0x20] sm:$0xff] %v253
    %257 = vst [vmem:[#allocation2 + $0x28] sm:$0xff] %v254
    %v258 = vld [vmem:[%s251] sm:$0xff]
    %v259 = vld [vmem:[%s251 + $0x8] sm:$0xff]
    %v260 = vld [vmem:[%s251 + $0x10] sm:$0xff]
    %v261 = vld [vmem:[%s251 + $0x18] sm:$0xff]
    %266 = vrot.lane.b32.xlu0 %v258, 127
    %v267 = vpop.permute.xlu0 %266
    %268 = vrot.lane.b32.xlu0 %v259, 127
    %v269 = vpop.permute.xlu0 %268
    %270 = vrot.lane.b32.xlu0 %v260, 127
    %v271 = vpop.permute.xlu0 %270
    %272 = vrot.lane.b32.xlu0 %v261, 127
    %v273 = vpop.permute.xlu0 %272
    %v274 = vsel %vm59, %v267, %v269
    %v275 = vsel %vm59, %v269, %v271
    %v276 = vsel %vm59, %v271, %v273
    %280 = vst [vmem:[#allocation2 + $0x48] sm:$0xff] %v274
    %281 = vst [vmem:[#allocation2 + $0x50] sm:$0xff] %v275
    %282 = vst [vmem:[#allocation2 + $0x58] sm:$0xff] %v276
    %v283 = vld [vmem:[%s251] sm:$0xff]
    %v284 = vld [vmem:[%s251 + $0x8] sm:$0xff]
    %v285 = vld [vmem:[%s251 + $0x10] sm:$0xff]
    %v286 = vld [vmem:[%s251 + $0x18] sm:$0xff]
    %291 = vrot.lane.b32.xlu0 %v283, 126
    %v292 = vpop.permute.xlu0 %291
    %293 = vrot.lane.b32.xlu0 %v284, 126
    %v294 = vpop.permute.xlu0 %293
    %295 = vrot.lane.b32.xlu0 %v285, 126
    %v296 = vpop.permute.xlu0 %295
    %297 = vrot.lane.b32.xlu0 %v286, 126
    %v298 = vpop.permute.xlu0 %297
    %v299 = vsel %vm85, %v292, %v294
    %v300 = vsel %vm85, %v294, %v296
    %v301 = vsel %vm85, %v296, %v298
    %305 = vst [vmem:[#allocation2 + $0x78] sm:$0xff] %v299
    %306 = vst [vmem:[#allocation2 + $0x80] sm:$0xff] %v300
    %307 = vst [vmem:[#allocation2 + $0x88] sm:$0xff] %v301
    %v308 = vld [vmem:[%s251] sm:$0xff]
    %v309 = vld [vmem:[%s251 + $0x8] sm:$0xff]
    %v310 = vld [vmem:[%s251 + $0x10] sm:$0xff]
    %v311 = vld [vmem:[%s251 + $0x18] sm:$0xff]
    %316 = vrot.lane.b32.xlu0 %v308, 110
    %v317 = vpop.permute.xlu0 %316
    %318 = vrot.lane.b32.xlu0 %v309, 110
    %v319 = vpop.permute.xlu0 %318
    %320 = vrot.lane.b32.xlu0 %v310, 110
    %v321 = vpop.permute.xlu0 %320
    %322 = vrot.lane.b32.xlu0 %v311, 110
    %v323 = vpop.permute.xlu0 %322
    %v324 = vsel %vm111, %v317, %v319
    %v325 = vsel %vm111, %v319, %v321
    %v326 = vsel %vm111, %v321, %v323
    %330 = vst [vmem:[#allocation2 + $0xa8] sm:$0xff] %v324
    %331 = vst [vmem:[#allocation2 + $0xb0] sm:$0xff] %v325
    %332 = vst [vmem:[#allocation2 + $0xb8] sm:$0xff] %v326
    %v333 = vld [vmem:[%s251] sm:$0xff]
    %v334 = vld [vmem:[%s251 + $0x8] sm:$0xff]
    %v335 = vld [vmem:[%s251 + $0x10] sm:$0xff]
    %v336 = vld [vmem:[%s251 + $0x18] sm:$0xff]
    %341 = vrot.lane.b32.xlu0 %v333, 109
    %v342 = vpop.permute.xlu0 %341
    %343 = vrot.lane.b32.xlu0 %v334, 109
    %v344 = vpop.permute.xlu0 %343
    %345 = vrot.lane.b32.xlu0 %v335, 109
    %v346 = vpop.permute.xlu0 %345
    %347 = vrot.lane.b32.xlu0 %v336, 109
    %v348 = vpop.permute.xlu0 %347
    %v349 = vsel %vm137, %v342, %v344
    %v350 = vsel %vm137, %v344, %v346
    %v351 = vsel %vm137, %v346, %v348
    %355 = vst [vmem:[#allocation2 + $0xd8] sm:$0xff] %v349
    %356 = vst [vmem:[#allocation2 + $0xe0] sm:$0xff] %v350
    %357 = vst [vmem:[#allocation2 + $0xe8] sm:$0xff] %v351
    %v358 = vld [vmem:[%s251] sm:$0xff]
    %v359 = vld [vmem:[%s251 + $0x8] sm:$0xff]
    %v360 = vld [vmem:[%s251 + $0x10] sm:$0xff]
    %v361 = vld [vmem:[%s251 + $0x18] sm:$0xff]
    %366 = vrot.lane.b32.xlu0 %v358, 108
    %v367 = vpop.permute.xlu0 %366
    %368 = vrot.lane.b32.xlu0 %v359, 108
    %v369 = vpop.permute.xlu0 %368
    %370 = vrot.lane.b32.xlu0 %v360, 108
    %v371 = vpop.permute.xlu0 %370
    %372 = vrot.lane.b32.xlu0 %v361, 108
    %v373 = vpop.permute.xlu0 %372
    %v374 = vsel %vm163, %v367, %v369
    %v375 = vsel %vm163, %v369, %v371
    %v376 = vsel %vm163, %v371, %v373
    %380 = vst [vmem:[#allocation2 + $0x108] sm:$0xff] %v374
    %381 = vst [vmem:[#allocation2 + $0x110] sm:$0xff] %v375
    %382 = vst [vmem:[#allocation2 + $0x118] sm:$0xff] %v376
    %v383 = vld [vmem:[%s251] sm:$0xff]
    %v384 = vld [vmem:[%s251 + $0x8] sm:$0xff]
    %v385 = vld [vmem:[%s251 + $0x10] sm:$0xff]
    %v386 = vld [vmem:[%s251 + $0x18] sm:$0xff]
    %391 = vrot.lane.b32.xlu0 %v383, 92
    %v392 = vpop.permute.xlu0 %391
    %393 = vrot.lane.b32.xlu0 %v384, 92
    %v394 = vpop.permute.xlu0 %393
    %395 = vrot.lane.b32.xlu0 %v385, 92
    %v396 = vpop.permute.xlu0 %395
    %397 = vrot.lane.b32.xlu0 %v386, 92
    %v398 = vpop.permute.xlu0 %397
    %v399 = vsel %vm189, %v392, %v394
    %v400 = vsel %vm189, %v394, %v396
    %v401 = vsel %vm189, %v396, %v398
    %405 = vst [vmem:[#allocation2 + $0x138] sm:$0xff] %v399
    %406 = vst [vmem:[#allocation2 + $0x140] sm:$0xff] %v400
    %407 = vst [vmem:[#allocation2 + $0x148] sm:$0xff] %v401
    %v408 = vld [vmem:[%s251] sm:$0xff]
    %v409 = vld [vmem:[%s251 + $0x8] sm:$0xff]
    %v410 = vld [vmem:[%s251 + $0x10] sm:$0xff]
    %v411 = vld [vmem:[%s251 + $0x18] sm:$0xff]
    %416 = vrot.lane.b32.xlu0 %v408, 91
    %v417 = vpop.permute.xlu0 %416
    %418 = vrot.lane.b32.xlu0 %v409, 91
    %v419 = vpop.permute.xlu0 %418
    %420 = vrot.lane.b32.xlu0 %v410, 91
    %v421 = vpop.permute.xlu0 %420
    %422 = vrot.lane.b32.xlu0 %v411, 91
    %v423 = vpop.permute.xlu0 %422
    %v424 = vsel %vm215, %v417, %v419
    %v425 = vsel %vm215, %v419, %v421
    %v426 = vsel %vm215, %v421, %v423
    %430 = vst [vmem:[#allocation2 + $0x168] sm:$0xff] %v424
    %431 = vst [vmem:[#allocation2 + $0x170] sm:$0xff] %v425
    %432 = vst [vmem:[#allocation2 + $0x178] sm:$0xff] %v426
    %v433 = vld [vmem:[%s251] sm:$0xff]
    %v434 = vld [vmem:[%s251 + $0x8] sm:$0xff]
    %v435 = vld [vmem:[%s251 + $0x10] sm:$0xff]
    %v436 = vld [vmem:[%s251 + $0x18] sm:$0xff]
    %441 = vrot.lane.b32.xlu0 %v433, 90
    %v442 = vpop.permute.xlu0 %441
    %443 = vrot.lane.b32.xlu0 %v434, 90
    %v444 = vpop.permute.xlu0 %443
    %445 = vrot.lane.b32.xlu0 %v435, 90
    %v446 = vpop.permute.xlu0 %445
    %447 = vrot.lane.b32.xlu0 %v436, 90
    %v448 = vpop.permute.xlu0 %447
    %v449 = vsel %vm241, %v442, %v444
    %v450 = vsel %vm241, %v444, %v446
    %v451 = vsel %vm241, %v446, %v448
    %455 = vst [vmem:[#allocation2 + $0x198] sm:$0xff] %v449
    %456 = vst [vmem:[#allocation2 + $0x1a0] sm:$0xff] %v450
    %457 = vst [vmem:[#allocation2 + $0x1a8] sm:$0xff] %v451
    %v458 = vld [vmem:[%s1] sm:$0xff]
    %v459 = vld [vmem:[%s1 + $0x8] sm:$0xff]
    %v460 = vld [vmem:[%s1 + $0x10] sm:$0xff]
    %v461 = vld [vmem:[#allocation2] sm:$0xff]
    %v462 = vld [vmem:[#allocation2 + $0x8] sm:$0xff]
    %v463 = vld [vmem:[#allocation2 + $0x10] sm:$0xff]
    %v464 = vld [vmem:[#allocation2 + $0x18] sm:$0xff]
    %v465 = vld [vmem:[#allocation2 + $0x20] sm:$0xff]
    %v466 = vld [vmem:[#allocation2 + $0x28] sm:$0xff]
    %v467 = vld [vmem:[#allocation2 + $0x30] sm:$0xff]
    %v468 = vld [vmem:[#allocation2 + $0x38] sm:$0xff]
    %v469 = vld [vmem:[#allocation2 + $0x40] sm:$0xff]
    %v470 = vld [vmem:[#allocation2 + $0x48] sm:$0xff]
    %v471 = vld [vmem:[#allocation2 + $0x50] sm:$0xff]
    %v472 = vld [vmem:[#allocation2 + $0x58] sm:$0xff]
    %v473 = vld [vmem:[#allocation2 + $0x60] sm:$0xff]
    %v474 = vld [vmem:[#allocation2 + $0x68] sm:$0xff]
    %v475 = vld [vmem:[#allocation2 + $0x70] sm:$0xff]
    %v476 = vld [vmem:[#allocation2 + $0x78] sm:$0xff]
    %v477 = vld [vmem:[#allocation2 + $0x80] sm:$0xff]
    %v478 = vld [vmem:[#allocation2 + $0x88] sm:$0xff]
    %v479 = vld [vmem:[#allocation2 + $0x90] sm:$0xff]
    %v480 = vld [vmem:[#allocation2 + $0x98] sm:$0xff]
    %v481 = vld [vmem:[#allocation2 + $0xa0] sm:$0xff]
    %v482 = vld [vmem:[#allocation2 + $0xa8] sm:$0xff]
    %v483 = vld [vmem:[#allocation2 + $0xb0] sm:$0xff]
    %v484 = vld [vmem:[#allocation2 + $0xb8] sm:$0xff]
    %v485 = vld [vmem:[#allocation2 + $0xc0] sm:$0xff]
    %v486 = vld [vmem:[#allocation2 + $0xc8] sm:$0xff]
    %v487 = vld [vmem:[#allocation2 + $0xd0] sm:$0xff]
    %v488 = vld [vmem:[#allocation2 + $0xd8] sm:$0xff]
    %v489 = vld [vmem:[#allocation2 + $0xe0] sm:$0xff]
    %v490 = vld [vmem:[#allocation2 + $0xe8] sm:$0xff]
    %v491 = vld [vmem:[#allocation2 + $0xf0] sm:$0xff]
    %v492 = vld [vmem:[#allocation2 + $0xf8] sm:$0xff]
    %v493 = vld [vmem:[#allocation2 + $0x100] sm:$0xff]
    %v494 = vld [vmem:[#allocation2 + $0x108] sm:$0xff]
    %v495 = vld [vmem:[#allocation2 + $0x110] sm:$0xff]
    %v496 = vld [vmem:[#allocation2 + $0x118] sm:$0xff]
    %v497 = vld [vmem:[#allocation2 + $0x120] sm:$0xff]
    %v498 = vld [vmem:[#allocation2 + $0x128] sm:$0xff]
    %v499 = vld [vmem:[#allocation2 + $0x130] sm:$0xff]
    %v500 = vld [vmem:[#allocation2 + $0x138] sm:$0xff]
    %v501 = vld [vmem:[#allocation2 + $0x140] sm:$0xff]
    %v502 = vld [vmem:[#allocation2 + $0x148] sm:$0xff]
    %v503 = vld [vmem:[#allocation2 + $0x150] sm:$0xff]
    %v504 = vld [vmem:[#allocation2 + $0x158] sm:$0xff]
    %v505 = vld [vmem:[#allocation2 + $0x160] sm:$0xff]
    %v506 = vld [vmem:[#allocation2 + $0x168] sm:$0xff]
    %v507 = vld [vmem:[#allocation2 + $0x170] sm:$0xff]
    %v508 = vld [vmem:[#allocation2 + $0x178] sm:$0xff]
    %v509 = vld [vmem:[#allocation2 + $0x180] sm:$0xff]
    %v510 = vld [vmem:[#allocation2 + $0x188] sm:$0xff]
    %v511 = vld [vmem:[#allocation2 + $0x190] sm:$0xff]
    %v512 = vld [vmem:[#allocation2 + $0x198] sm:$0xff]
    %v513 = vld [vmem:[#allocation2 + $0x1a0] sm:$0xff]
    %v514 = vld [vmem:[#allocation2 + $0x1a8] sm:$0xff]
    %v515 = vld [vmem:[%s2] sm:$0xff]
    %v516 = vld [vmem:[%s2 + $0x8] sm:$0xff]
    %v517 = vld [vmem:[%s2 + $0x10] sm:$0xff]
    %519 = vset.pattern.permute.xlu0 0
    %520 = vperm.xlu0 %519, %v515
    %v521 = vpop.permute.xlu0 %520
    %524 = vset.pattern.permute.xlu0 0
    %525 = vperm.xlu0 %524, %v516
    %v526 = vpop.permute.xlu0 %525
    %529 = vset.pattern.permute.xlu0 0
    %530 = vperm.xlu0 %529, %v517
    %v531 = vpop.permute.xlu0 %530
    %vm533 = vcmask 588800
    %v535 = vsel %vm533, %v458, 0
    %v538 = vsel %vm533, %v459, 0
    %v541 = vsel %vm533, %v460, 0
    %543 = vmatpush.msra.mxu0 0.0
    %544 = vmatpush.msra.mxu0 0.0
    %545 = vmatpush.msra.mxu0 0.0
    %546 = vmatpush.msra.mxu0 0.0
    %547 = vmatpush.msra.mxu0 0.0
    %548 = vmatpush.msra.mxu0 0.0
    %549 = vmatpush.msra.mxu0 0.0
    %550 = vmatpush.msra.mxu0 %v509
    %551 = vmatpush.msra.mxu0 %v503
    %552 = vmatpush.msra.mxu0 %v497
    %553 = vmatpush.msra.mxu0 %v491
    %554 = vmatpush.msra.mxu0 %v485
    %555 = vmatpush.msra.mxu0 %v479
    %556 = vmatpush.msra.mxu0 %v473
    %557 = vmatpush.msra.mxu0 %v467
    %558 = vmatpush.msra.mxu0 %v461
    %559 = vmatmul.f32.gmra.mxu0 %v535
    %v560 = vpop.f32.mrf.mxu0
    %v561 = vadd.f32 %v521, %v560
    %562 = vmatmul.f32.gmra.mxu0 %v538
    %v563 = vpop.f32.mrf.mxu0
    %v564 = vadd.f32 %v526, %v563
    %565 = vmatmul.f32.gmra.mxu0 %v541
    %v566 = vpop.f32.mrf.mxu0
    %v567 = vadd.f32 %v531, %v566
    %568 = vdwg.mxu0
    %569 = vmatpush.msra.mxu0 0.0
    %570 = vmatpush.msra.mxu0 0.0
    %571 = vmatpush.msra.mxu0 0.0
    %572 = vmatpush.msra.mxu0 0.0
    %573 = vmatpush.msra.mxu0 0.0
    %574 = vmatpush.msra.mxu0 0.0
    %575 = vmatpush.msra.mxu0 0.0
    %576 = vmatpush.msra.mxu0 %v510
    %577 = vmatpush.msra.mxu0 %v504
    %578 = vmatpush.msra.mxu0 %v498
    %579 = vmatpush.msra.mxu0 %v492
    %580 = vmatpush.msra.mxu0 %v486
    %581 = vmatpush.msra.mxu0 %v480
    %582 = vmatpush.msra.mxu0 %v474
    %583 = vmatpush.msra.mxu0 %v468
    %584 = vmatpush.msra.mxu0 %v462
    %585 = vmatmul.f32.gmra.mxu0 %v535
    %v586 = vpop.f32.mrf.mxu0
    %v587 = vadd.f32 %v521, %v586
    %588 = vmatmul.f32.gmra.mxu0 %v538
    %v589 = vpop.f32.mrf.mxu0
    %v590 = vadd.f32 %v526, %v589
    %591 = vmatmul.f32.gmra.mxu0 %v541
    %v592 = vpop.f32.mrf.mxu0
    %v593 = vadd.f32 %v531, %v592
    %594 = vdwg.mxu0
    %595 = vmatpush.msra.mxu0 0.0
    %596 = vmatpush.msra.mxu0 0.0
    %597 = vmatpush.msra.mxu0 0.0
    %598 = vmatpush.msra.mxu0 0.0
    %599 = vmatpush.msra.mxu0 0.0
    %600 = vmatpush.msra.mxu0 0.0
    %601 = vmatpush.msra.mxu0 0.0
    %602 = vmatpush.msra.mxu0 %v511
    %603 = vmatpush.msra.mxu0 %v505
    %604 = vmatpush.msra.mxu0 %v499
    %605 = vmatpush.msra.mxu0 %v493
    %606 = vmatpush.msra.mxu0 %v487
    %607 = vmatpush.msra.mxu0 %v481
    %608 = vmatpush.msra.mxu0 %v475
    %609 = vmatpush.msra.mxu0 %v469
    %610 = vmatpush.msra.mxu0 %v463
    %611 = vmatmul.f32.gmra.mxu0 %v535
    %v612 = vpop.f32.mrf.mxu0
    %v613 = vadd.f32 %v521, %v612
    %614 = vmatmul.f32.gmra.mxu0 %v538
    %v615 = vpop.f32.mrf.mxu0
    %v616 = vadd.f32 %v526, %v615
    %617 = vmatmul.f32.gmra.mxu0 %v541
    %v618 = vpop.f32.mrf.mxu0
    %v619 = vadd.f32 %v531, %v618
    %620 = vdwg.mxu0
    %621 = vmatpush.msra.mxu0 0.0
    %622 = vmatpush.msra.mxu0 0.0
    %623 = vmatpush.msra.mxu0 0.0
    %624 = vmatpush.msra.mxu0 0.0
    %625 = vmatpush.msra.mxu0 0.0
    %626 = vmatpush.msra.mxu0 0.0
    %627 = vmatpush.msra.mxu0 0.0
    %628 = vmatpush.msra.mxu0 %v512
    %629 = vmatpush.msra.mxu0 %v506
    %630 = vmatpush.msra.mxu0 %v500
    %631 = vmatpush.msra.mxu0 %v494
    %632 = vmatpush.msra.mxu0 %v488
    %633 = vmatpush.msra.mxu0 %v482
    %634 = vmatpush.msra.mxu0 %v476
    %635 = vmatpush.msra.mxu0 %v470
    %636 = vmatpush.msra.mxu0 %v464
    %637 = vmatmul.f32.gmra.mxu0 %v535
    %v638 = vpop.f32.mrf.mxu0
    %v639 = vadd.f32 %v521, %v638
    %640 = vmatmul.f32.gmra.mxu0 %v538
    %v641 = vpop.f32.mrf.mxu0
    %v642 = vadd.f32 %v526, %v641
    %643 = vmatmul.f32.gmra.mxu0 %v541
    %v644 = vpop.f32.mrf.mxu0
    %v645 = vadd.f32 %v531, %v644
    %646 = vdwg.mxu0
    %647 = vmatpush.msra.mxu0 0.0
    %648 = vmatpush.msra.mxu0 0.0
    %649 = vmatpush.msra.mxu0 0.0
    %650 = vmatpush.msra.mxu0 0.0
    %651 = vmatpush.msra.mxu0 0.0
    %652 = vmatpush.msra.mxu0 0.0
    %653 = vmatpush.msra.mxu0 0.0
    %654 = vmatpush.msra.mxu0 %v513
    %655 = vmatpush.msra.mxu0 %v507
    %656 = vmatpush.msra.mxu0 %v501
    %657 = vmatpush.msra.mxu0 %v495
    %658 = vmatpush.msra.mxu0 %v489
    %659 = vmatpush.msra.mxu0 %v483
    %660 = vmatpush.msra.mxu0 %v477
    %661 = vmatpush.msra.mxu0 %v471
    %662 = vmatpush.msra.mxu0 %v465
    %663 = vmatmul.f32.gmra.mxu0 %v535
    %v664 = vpop.f32.mrf.mxu0
    %v665 = vadd.f32 %v521, %v664
    %666 = vmatmul.f32.gmra.mxu0 %v538
    %v667 = vpop.f32.mrf.mxu0
    %v668 = vadd.f32 %v526, %v667
    %669 = vmatmul.f32.gmra.mxu0 %v541
    %v670 = vpop.f32.mrf.mxu0
    %v671 = vadd.f32 %v531, %v670
    %672 = vdwg.mxu0
    %673 = vmatpush.msra.mxu0 0.0
    %674 = vmatpush.msra.mxu0 0.0
    %675 = vmatpush.msra.mxu0 0.0
    %676 = vmatpush.msra.mxu0 0.0
    %677 = vmatpush.msra.mxu0 0.0
    %678 = vmatpush.msra.mxu0 0.0
    %679 = vmatpush.msra.mxu0 0.0
    %680 = vmatpush.msra.mxu0 %v514
    %681 = vmatpush.msra.mxu0 %v508
    %682 = vmatpush.msra.mxu0 %v502
    %683 = vmatpush.msra.mxu0 %v496
    %684 = vmatpush.msra.mxu0 %v490
    %685 = vmatpush.msra.mxu0 %v484
    %686 = vmatpush.msra.mxu0 %v478
    %687 = vmatpush.msra.mxu0 %v472
    %688 = vmatpush.msra.mxu0 %v466
    %689 = vmatmul.f32.gmra.mxu0 %v535
    %v690 = vpop.f32.mrf.mxu0
    %v691 = vadd.f32 %v521, %v690
    %692 = vmatmul.f32.gmra.mxu0 %v538
    %v693 = vpop.f32.mrf.mxu0
    %v694 = vadd.f32 %v526, %v693
    %695 = vmatmul.f32.gmra.mxu0 %v541
    %v696 = vpop.f32.mrf.mxu0
    %v697 = vadd.f32 %v531, %v696
    %698 = vdwg.mxu0
    %v699 = vmax.f32 %v561, 0.0
    %v700 = vmax.f32 %v587, 0.0
    %v701 = vmax.f32 %v613, 0.0
    %v702 = vmax.f32 %v639, 0.0
    %v703 = vmax.f32 %v665, 0.0
    %v704 = vmax.f32 %v691, 0.0
    %v705 = vmax.f32 %v564, 0.0
    %v706 = vmax.f32 %v590, 0.0
    %v707 = vmax.f32 %v616, 0.0
    %v708 = vmax.f32 %v642, 0.0
    %v709 = vmax.f32 %v668, 0.0
    %v710 = vmax.f32 %v694, 0.0
    %v711 = vmax.f32 %v567, 0.0
    %v712 = vmax.f32 %v593, 0.0
    %v713 = vmax.f32 %v619, 0.0
    %v714 = vmax.f32 %v645, 0.0
    %v715 = vmax.f32 %v671, 0.0
    %v716 = vmax.f32 %v697, 0.0
    %v717 = vld [vmem:[%s3] sm:$0xff]
    %v718 = vld [vmem:[%s4] sm:$0xff]
    %720 = vset.pattern.permute.xlu0 0
    %721 = vperm.xlu0 %720, %v718
    %v722 = vpop.permute.xlu0 %721
    %vm724 = vcmask 195584
    %v726 = vsel %vm724, %v717, 0
    %728 = vmatpush.msra.mxu0 0.0
    %729 = vmatpush.msra.mxu0 0.0
    %730 = vmatpush.msra.mxu0 0.0
    %731 = vmatpush.msra.mxu0 0.0
    %732 = vmatpush.msra.mxu0 0.0
    %733 = vmatpush.msra.mxu0 0.0
    %734 = vmatpush.msra.mxu0 0.0
    %735 = vmatpush.msra.mxu0 0.0
    %736 = vmatpush.msra.mxu0 0.0
    %737 = vmatpush.msra.mxu0 0.0
    %738 = vmatpush.msra.mxu0 0.0
    %739 = vmatpush.msra.mxu0 0.0
    %740 = vmatpush.msra.mxu0 0.0
    %741 = vmatpush.msra.mxu0 %v711
    %742 = vmatpush.msra.mxu0 %v705
    %743 = vmatpush.msra.mxu0 %v699
    %744 = vmatmul.f32.gmra.mxu0 %v726
    %v745 = vpop.f32.mrf.mxu0
    %v746 = vadd.f32 %v722, %v745
    %747 = vdwg.mxu0
    %748 = vmatpush.msra.mxu0 0.0
    %749 = vmatpush.msra.mxu0 0.0
    %750 = vmatpush.msra.mxu0 0.0
    %751 = vmatpush.msra.mxu0 0.0
    %752 = vmatpush.msra.mxu0 0.0
    %753 = vmatpush.msra.mxu0 0.0
    %754 = vmatpush.msra.mxu0 0.0
    %755 = vmatpush.msra.mxu0 0.0
    %756 = vmatpush.msra.mxu0 0.0
    %757 = vmatpush.msra.mxu0 0.0
    %758 = vmatpush.msra.mxu0 0.0
    %759 = vmatpush.msra.mxu0 0.0
    %760 = vmatpush.msra.mxu0 0.0
    %761 = vmatpush.msra.mxu0 %v712
    %762 = vmatpush.msra.mxu0 %v706
    %763 = vmatpush.msra.mxu0 %v700
    %764 = vmatmul.f32.gmra.mxu0 %v726
    %v765 = vpop.f32.mrf.mxu0
    %v766 = vadd.f32 %v722, %v765
    %767 = vdwg.mxu0
    %768 = vmatpush.msra.mxu0 0.0
    %769 = vmatpush.msra.mxu0 0.0
    %770 = vmatpush.msra.mxu0 0.0
    %771 = vmatpush.msra.mxu0 0.0
    %772 = vmatpush.msra.mxu0 0.0
    %773 = vmatpush.msra.mxu0 0.0
    %774 = vmatpush.msra.mxu0 0.0
    %775 = vmatpush.msra.mxu0 0.0
    %776 = vmatpush.msra.mxu0 0.0
    %777 = vmatpush.msra.mxu0 0.0
    %778 = vmatpush.msra.mxu0 0.0
    %779 = vmatpush.msra.mxu0 0.0
    %780 = vmatpush.msra.mxu0 0.0
    %781 = vmatpush.msra.mxu0 %v713
    %782 = vmatpush.msra.mxu0 %v707
    %783 = vmatpush.msra.mxu0 %v701
    %784 = vmatmul.f32.gmra.mxu0 %v726
    %v785 = vpop.f32.mrf.mxu0
    %v786 = vadd.f32 %v722, %v785
    %787 = vdwg.mxu0
    %788 = vmatpush.msra.mxu0 0.0
    %789 = vmatpush.msra.mxu0 0.0
    %790 = vmatpush.msra.mxu0 0.0
    %791 = vmatpush.msra.mxu0 0.0
    %792 = vmatpush.msra.mxu0 0.0
    %793 = vmatpush.msra.mxu0 0.0
    %794 = vmatpush.msra.mxu0 0.0
    %795 = vmatpush.msra.mxu0 0.0
    %796 = vmatpush.msra.mxu0 0.0
    %797 = vmatpush.msra.mxu0 0.0
    %798 = vmatpush.msra.mxu0 0.0
    %799 = vmatpush.msra.mxu0 0.0
    %800 = vmatpush.msra.mxu0 0.0
    %801 = vmatpush.msra.mxu0 %v714
    %802 = vmatpush.msra.mxu0 %v708
    %803 = vmatpush.msra.mxu0 %v702
    %804 = vmatmul.f32.gmra.mxu0 %v726
    %v805 = vpop.f32.mrf.mxu0
    %v806 = vadd.f32 %v722, %v805
    %807 = vdwg.mxu0
    %808 = vmatpush.msra.mxu0 0.0
    %809 = vmatpush.msra.mxu0 0.0
    %810 = vmatpush.msra.mxu0 0.0
    %811 = vmatpush.msra.mxu0 0.0
    %812 = vmatpush.msra.mxu0 0.0
    %813 = vmatpush.msra.mxu0 0.0
    %814 = vmatpush.msra.mxu0 0.0
    %815 = vmatpush.msra.mxu0 0.0
    %816 = vmatpush.msra.mxu0 0.0
    %817 = vmatpush.msra.mxu0 0.0
    %818 = vmatpush.msra.mxu0 0.0
    %819 = vmatpush.msra.mxu0 0.0
    %820 = vmatpush.msra.mxu0 0.0
    %821 = vmatpush.msra.mxu0 %v715
    %822 = vmatpush.msra.mxu0 %v709
    %823 = vmatpush.msra.mxu0 %v703
    %824 = vmatmul.f32.gmra.mxu0 %v726
    %v825 = vpop.f32.mrf.mxu0
    %v826 = vadd.f32 %v722, %v825
    %827 = vdwg.mxu0
    %828 = vmatpush.msra.mxu0 0.0
    %829 = vmatpush.msra.mxu0 0.0
    %830 = vmatpush.msra.mxu0 0.0
    %831 = vmatpush.msra.mxu0 0.0
    %832 = vmatpush.msra.mxu0 0.0
    %833 = vmatpush.msra.mxu0 0.0
    %834 = vmatpush.msra.mxu0 0.0
    %835 = vmatpush.msra.mxu0 0.0
    %836 = vmatpush.msra.mxu0 0.0
    %837 = vmatpush.msra.mxu0 0.0
    %838 = vmatpush.msra.mxu0 0.0
    %839 = vmatpush.msra.mxu0 0.0
    %840 = vmatpush.msra.mxu0 0.0
    %841 = vmatpush.msra.mxu0 %v716
    %842 = vmatpush.msra.mxu0 %v710
    %843 = vmatpush.msra.mxu0 %v704
    %844 = vmatmul.f32.gmra.mxu0 %v726
    %v845 = vpop.f32.mrf.mxu0
    %v846 = vadd.f32 %v722, %v845
    %847 = vdwg.mxu0
    %v848 = vmax.f32 %v746, 0.0
    %v849 = vmax.f32 %v766, 0.0
    %v850 = vmax.f32 %v786, 0.0
    %v851 = vmax.f32 %v806, 0.0
    %v852 = vmax.f32 %v826, 0.0
    %v853 = vmax.f32 %v846, 0.0
    %854 = vst [vmem:[#allocation6] sm:$0xff] %v848
    %855 = vst [vmem:[#allocation6 + $0x8] sm:$0xff] %v849
    %856 = vst [vmem:[#allocation6 + $0x10] sm:$0xff] %v850
    %s857 = scalar_lea.vmem [#allocation6], 24
    %858 = vst [vmem:[%s857] sm:$0xff] %v851
    %859 = vst [vmem:[%s857 + $0x8] sm:$0xff] %v852
    %860 = vst [vmem:[%s857 + $0x10] sm:$0xff] %v853
    // Predicated region
    $region26: #{tpu_custom_call.1} parent=1 // pred_check
      _
    $region27: #{tpu_custom_call.1} parent=1 // pred_check_branch
      %862 = sbr.rel (0) target = $region29
    $region28: #{tpu_custom_call.1} parent=1 // pred_region
      %864 = vsyncadd [#allocation5], 0
      %s865 = sshll.u32 [#allocation6], 4
      %s866 = int_to_ptr.vmem [resolvable:$true] %s865
      %s867 = sshll.u32 %s5, 4
      %s868 = int_to_ptr.hbm [resolvable:$true] %s867
      %873 = dma.vmem_to_hbm [thread:$0]  %s866, 768, %s868, [#allocation5], 384, 384, 24
    $region29: #{tpu_custom_call.1} parent=1 // pred_fallthru
      _
    // Predicated region
    $region30: #{tpu_custom_call.1} parent=1 // pred_check
      _
    $region31: #{tpu_custom_call.1} parent=1 // pred_check_branch
      %875 = sbr.rel (0) target = $region33
    $region32: #{tpu_custom_call.1} parent=1 // pred_region
      %877 = dma.done [#allocation5], 768
    $region33: #{tpu_custom_call.1} parent=1 // pred_fallthru
      _
    %878 = vsyncpa [#allocation4], 1
    %879 = vsyncpa [#allocation5], 1

// kernel: tpu_custom_call.1
$region0: #{tpu_custom_call.1}
  #allocation0 [shape = 'u32[]', space=smem, size = 0x4, offset = 0x4, fixed_abs, tag = 'smem constant byte address 0x4 - core index']
  #allocation1 [shape = 'u32[72,128]{1,0:T(1,128)}', space=vmem, size = 0x9000, scoped, tag = 'internal scratch']
  #allocation2 [shape = 'f32[72,768]{1,0:T(8,128)}', space=vmem, size = 0x36000, scoped, tag = 'scratch operand']
  %s0 = inlined_call_operand.hbm [shape: f32[2,8,512], index: 0, kind: input, shape index: {}]
  %s1 = inlined_call_operand.vmem [shape: f32[24,72], index: 1, kind: input, shape index: {}]
  %s2 = inlined_call_operand.vmem [shape: f32[24,1], index: 2, kind: input, shape index: {}]
  %s3 = inlined_call_operand.vmem [shape: f32[8,24], index: 3, kind: input, shape index: {}]
  %s4 = inlined_call_operand.vmem [shape: f32[8,1], index: 4, kind: input, shape index: {}]
  %s5 = inlined_call_operand.hbm [shape: f32[2,8,384], index: 5, kind: output, shape index: {}]
  %s6 = sld [smem:[#allocation0]]
  $region34: #{tpu_custom_call.1} parent=0
    _
  %s8 = ssub.s32 1, %s6
  %s9 = scalar_select 0, %s8, %s6
  $region1: #{tpu_custom_call.1} parent=0
    #allocation3 [shape = 'u8[32768]{0}', space=vmem, size = 0x8000, scoped, tag = 'input window, operand 0, single buffered']
    #allocation4 [shape = 's32[1]{0}', space=sflag, size = 0x4, scoped, tag = 'scoped memory for tpu_custom_call.1']
    #allocation5 [shape = 's32[1]{0}', space=sflag, size = 0x4, scoped, tag = 'scoped memory for tpu_custom_call.1']
    #allocation6 [shape = 'u8[24576]{0}', space=vmem, size = 0x6000, scoped, tag = 'output window, operand 0, single buffered']
    %10 = vsyncpa [#allocation4], 0
    %11 = vsyncpa [#allocation5], 0
    // Predicated region
    $region2: #{tpu_custom_call.1} parent=1 // pred_check
      _
    $region3: #{tpu_custom_call.1} parent=1 // pred_check_branch
      %13 = sbr.rel (0) target = $region5
    $region4: #{tpu_custom_call.1} parent=1 // pred_region
      %15 = vsyncadd [#allocation4], 0
      %s16 = sshll.u32 %s0, 4
      %s17 = int_to_ptr.hbm [resolvable:$true] %s16
      %s18 = sshll.u32 [#allocation3], 4
      %s19 = int_to_ptr.vmem [resolvable:$true] %s18
      %24 = dma.hbm_to_vmem [thread:$0]  %s17, 1024, %s19, [#allocation4], 512, 512, 32
    $region5: #{tpu_custom_call.1} parent=1 // pred_fallthru
      _
    // Predicated region
    $region6: #{tpu_custom_call.1} parent=1 // pred_check
      _
    $region7: #{tpu_custom_call.1} parent=1 // pred_check_branch
      %26 = sbr.rel (0) target = $region9
    $region8: #{tpu_custom_call.1} parent=1 // pred_region
      _
    $region9: #{tpu_custom_call.1} parent=1 // pred_fallthru
      _
    // Predicated region
    $region10: #{tpu_custom_call.1} parent=1 // pred_check
      _
    $region11: #{tpu_custom_call.1} parent=1 // pred_check_branch
      %28 = sbr.rel (0) target = $region13
    $region12: #{tpu_custom_call.1} parent=1 // pred_region
      _
    $region13: #{tpu_custom_call.1} parent=1 // pred_fallthru
      _
    // Predicated region
    $region14: #{tpu_custom_call.1} parent=1 // pred_check
      _
    $region15: #{tpu_custom_call.1} parent=1 // pred_check_branch
      %30 = sbr.rel (0) target = $region17
    $region16: #{tpu_custom_call.1} parent=1 // pred_region
      _
    $region17: #{tpu_custom_call.1} parent=1 // pred_fallthru
      _
    // Predicated region
    $region18: #{tpu_custom_call.1} parent=1 // pred_check
      _
    $region19: #{tpu_custom_call.1} parent=1 // pred_check_branch
      %32 = sbr.rel (0) target = $region21
    $region20: #{tpu_custom_call.1} parent=1 // pred_region
      _
    $region21: #{tpu_custom_call.1} parent=1 // pred_fallthru
      _
    // Predicated region
    $region22: #{tpu_custom_call.1} parent=1 // pred_check
      _
    $region23: #{tpu_custom_call.1} parent=1 // pred_check_branch
      %34 = sbr.rel (0) target = $region25
    $region24: #{tpu_custom_call.1} parent=1 // pred_region
      %36 = dma.done [#allocation4], 1024
    $region25: #{tpu_custom_call.1} parent=1 // pred_fallthru
      _
    %v37 = vld [vmem:[#allocation3] sm:$0xff]
    %v38 = vld [vmem:[#allocation3 + $0x8] sm:$0xff]
    %v39 = vld [vmem:[#allocation3 + $0x10] sm:$0xff]
    %40 = vst [vmem:[#allocation2] sm:$0xff] %v37
    %41 = vst [vmem:[#allocation2 + $0x8] sm:$0xff] %v38
    %42 = vst [vmem:[#allocation2 + $0x10] sm:$0xff] %v39
    %v43 = vld [vmem:[#allocation3] sm:$0xff]
    %v44 = vld [vmem:[#allocation3 + $0x8] sm:$0xff]
    %v45 = vld [vmem:[#allocation3 + $0x10] sm:$0xff]
    %v46 = vld [vmem:[#allocation3 + $0x18] sm:$0xff]
    %51 = vrot.lane.b32.xlu0 %v43, 127
    %v52 = vpop.permute.xlu0 %51
    %53 = vrot.lane.b32.xlu0 %v44, 127
    %v54 = vpop.permute.xlu0 %53
    %55 = vrot.lane.b32.xlu0 %v45, 127
    %v56 = vpop.permute.xlu0 %55
    %57 = vrot.lane.b32.xlu0 %v46, 127
    %v58 = vpop.permute.xlu0 %57
    %vm59 = vcmask 1039360
    %v60 = vsel %vm59, %v52, %v54
    %v61 = vsel %vm59, %v54, %v56
    %v62 = vsel %vm59, %v56, %v58
    %66 = vst [vmem:[#allocation2 + $0x30] sm:$0xff] %v60
    %67 = vst [vmem:[#allocation2 + $0x38] sm:$0xff] %v61
    %68 = vst [vmem:[#allocation2 + $0x40] sm:$0xff] %v62
    %v69 = vld [vmem:[#allocation3] sm:$0xff]
    %v70 = vld [vmem:[#allocation3 + $0x8] sm:$0xff]
    %v71 = vld [vmem:[#allocation3 + $0x10] sm:$0xff]
    %v72 = vld [vmem:[#allocation3 + $0x18] sm:$0xff]
    %77 = vrot.lane.b32.xlu0 %v69, 126
    %v78 = vpop.permute.xlu0 %77
    %79 = vrot.lane.b32.xlu0 %v70, 126
    %v80 = vpop.permute.xlu0 %79
    %81 = vrot.lane.b32.xlu0 %v71, 126
    %v82 = vpop.permute.xlu0 %81
    %83 = vrot.lane.b32.xlu0 %v72, 126
    %v84 = vpop.permute.xlu0 %83
    %vm85 = vcmask 1031168
    %v86 = vsel %vm85, %v78, %v80
    %v87 = vsel %vm85, %v80, %v82
    %v88 = vsel %vm85, %v82, %v84
    %92 = vst [vmem:[#allocation2 + $0x60] sm:$0xff] %v86
    %93 = vst [vmem:[#allocation2 + $0x68] sm:$0xff] %v87
    %94 = vst [vmem:[#allocation2 + $0x70] sm:$0xff] %v88
    %v95 = vld [vmem:[#allocation3] sm:$0xff]
    %v96 = vld [vmem:[#allocation3 + $0x8] sm:$0xff]
    %v97 = vld [vmem:[#allocation3 + $0x10] sm:$0xff]
    %v98 = vld [vmem:[#allocation3 + $0x18] sm:$0xff]
    %103 = vrot.lane.b32.xlu0 %v95, 110
    %v104 = vpop.permute.xlu0 %103
    %105 = vrot.lane.b32.xlu0 %v96, 110
    %v106 = vpop.permute.xlu0 %105
    %107 = vrot.lane.b32.xlu0 %v97, 110
    %v108 = vpop.permute.xlu0 %107
    %109 = vrot.lane.b32.xlu0 %v98, 110
    %v110 = vpop.permute.xlu0 %109
    %vm111 = vcmask 900096
    %v112 = vsel %vm111, %v104, %v106
    %v113 = vsel %vm111, %v106, %v108
    %v114 = vsel %vm111, %v108, %v110
    %118 = vst [vmem:[#allocation2 + $0x90] sm:$0xff] %v112
    %119 = vst [vmem:[#allocation2 + $0x98] sm:$0xff] %v113
    %120 = vst [vmem:[#allocation2 + $0xa0] sm:$0xff] %v114
    %v121 = vld [vmem:[#allocation3] sm:$0xff]
    %v122 = vld [vmem:[#allocation3 + $0x8] sm:$0xff]
    %v123 = vld [vmem:[#allocation3 + $0x10] sm:$0xff]
    %v124 = vld [vmem:[#allocation3 + $0x18] sm:$0xff]
    %129 = vrot.lane.b32.xlu0 %v121, 109
    %v130 = vpop.permute.xlu0 %129
    %131 = vrot.lane.b32.xlu0 %v122, 109
    %v132 = vpop.permute.xlu0 %131
    %133 = vrot.lane.b32.xlu0 %v123, 109
    %v134 = vpop.permute.xlu0 %133
    %135 = vrot.lane.b32.xlu0 %v124, 109
    %v136 = vpop.permute.xlu0 %135
    %vm137 = vcmask 891904
    %v138 = vsel %vm137, %v130, %v132
    %v139 = vsel %vm137, %v132, %v134
    %v140 = vsel %vm137, %v134, %v136
    %144 = vst [vmem:[#allocation2 + $0xc0] sm:$0xff] %v138
    %145 = vst [vmem:[#allocation2 + $0xc8] sm:$0xff] %v139
    %146 = vst [vmem:[#allocation2 + $0xd0] sm:$0xff] %v140
    %v147 = vld [vmem:[#allocation3] sm:$0xff]
    %v148 = vld [vmem:[#allocation3 + $0x8] sm:$0xff]
    %v149 = vld [vmem:[#allocation3 + $0x10] sm:$0xff]
    %v150 = vld [vmem:[#allocation3 + $0x18] sm:$0xff]
    %155 = vrot.lane.b32.xlu0 %v147, 108
    %v156 = vpop.permute.xlu0 %155
    %157 = vrot.lane.b32.xlu0 %v148, 108
    %v158 = vpop.permute.xlu0 %157
    %159 = vrot.lane.b32.xlu0 %v149, 108
    %v160 = vpop.permute.xlu0 %159
    %161 = vrot.lane.b32.xlu0 %v150, 108
    %v162 = vpop.permute.xlu0 %161
    %vm163 = vcmask 883712
    %v164 = vsel %vm163, %v156, %v158
    %v165 = vsel %vm163, %v158, %v160
    %v166 = vsel %vm163, %v160, %v162
    %170 = vst [vmem:[#allocation2 + $0xf0] sm:$0xff] %v164
    %171 = vst [vmem:[#allocation2 + $0xf8] sm:$0xff] %v165
    %172 = vst [vmem:[#allocation2 + $0x100] sm:$0xff] %v166
    %v173 = vld [vmem:[#allocation3] sm:$0xff]
    %v174 = vld [vmem:[#allocation3 + $0x8] sm:$0xff]
    %v175 = vld [vmem:[#allocation3 + $0x10] sm:$0xff]
    %v176 = vld [vmem:[#allocation3 + $0x18] sm:$0xff]
    %181 = vrot.lane.b32.xlu0 %v173, 92
    %v182 = vpop.permute.xlu0 %181
    %183 = vrot.lane.b32.xlu0 %v174, 92
    %v184 = vpop.permute.xlu0 %183
    %185 = vrot.lane.b32.xlu0 %v175, 92
    %v186 = vpop.permute.xlu0 %185
    %187 = vrot.lane.b32.xlu0 %v176, 92
    %v188 = vpop.permute.xlu0 %187
    %vm189 = vcmask 752640
    %v190 = vsel %vm189, %v182, %v184
    %v191 = vsel %vm189, %v184, %v186
    %v192 = vsel %vm189, %v186, %v188
    %196 = vst [vmem:[#allocation2 + $0x120] sm:$0xff] %v190
    %197 = vst [vmem:[#allocation2 + $0x128] sm:$0xff] %v191
    %198 = vst [vmem:[#allocation2 + $0x130] sm:$0xff] %v192
    %v199 = vld [vmem:[#allocation3] sm:$0xff]
    %v200 = vld [vmem:[#allocation3 + $0x8] sm:$0xff]
    %v201 = vld [vmem:[#allocation3 + $0x10] sm:$0xff]
    %v202 = vld [vmem:[#allocation3 + $0x18] sm:$0xff]
    %207 = vrot.lane.b32.xlu0 %v199, 91
    %v208 = vpop.permute.xlu0 %207
    %209 = vrot.lane.b32.xlu0 %v200, 91
    %v210 = vpop.permute.xlu0 %209
    %211 = vrot.lane.b32.xlu0 %v201, 91
    %v212 = vpop.permute.xlu0 %211
    %213 = vrot.lane.b32.xlu0 %v202, 91
    %v214 = vpop.permute.xlu0 %213
    %vm215 = vcmask 744448
    %v216 = vsel %vm215, %v208, %v210
    %v217 = vsel %vm215, %v210, %v212
    %v218 = vsel %vm215, %v212, %v214
    %222 = vst [vmem:[#allocation2 + $0x150] sm:$0xff] %v216
    %223 = vst [vmem:[#allocation2 + $0x158] sm:$0xff] %v217
    %224 = vst [vmem:[#allocation2 + $0x160] sm:$0xff] %v218
    %v225 = vld [vmem:[#allocation3] sm:$0xff]
    %v226 = vld [vmem:[#allocation3 + $0x8] sm:$0xff]
    %v227 = vld [vmem:[#allocation3 + $0x10] sm:$0xff]
    %v228 = vld [vmem:[#allocation3 + $0x18] sm:$0xff]
    %233 = vrot.lane.b32.xlu0 %v225, 90
    %v234 = vpop.permute.xlu0 %233
    %235 = vrot.lane.b32.xlu0 %v226, 90
    %v236 = vpop.permute.xlu0 %235
    %237 = vrot.lane.b32.xlu0 %v227, 90
    %v238 = vpop.permute.xlu0 %237
    %239 = vrot.lane.b32.xlu0 %v228, 90
    %v240 = vpop.permute.xlu0 %239
    %vm241 = vcmask 736256
    %v242 = vsel %vm241, %v234, %v236
    %v243 = vsel %vm241, %v236, %v238
    %v244 = vsel %vm241, %v238, %v240
    %248 = vst [vmem:[#allocation2 + $0x180] sm:$0xff] %v242
    %249 = vst [vmem:[#allocation2 + $0x188] sm:$0xff] %v243
    %250 = vst [vmem:[#allocation2 + $0x190] sm:$0xff] %v244
    %s251 = scalar_lea.vmem [#allocation3], 32
    %v252 = vld [vmem:[%s251] sm:$0xff]
    %v253 = vld [vmem:[%s251 + $0x8] sm:$0xff]
    %v254 = vld [vmem:[%s251 + $0x10] sm:$0xff]
    %255 = vst [vmem:[#allocation2 + $0x18] sm:$0xff] %v252
    %256 = vst [vmem:[#allocation2 + $0x20] sm:$0xff] %v253
    %257 = vst [vmem:[#allocation2 + $0x28] sm:$0xff] %v254
    %v258 = vld [vmem:[%s251] sm:$0xff]
    %v259 = vld [vmem:[%s251 + $0x8] sm:$0xff]
    %v260 = vld [vmem:[%s251 + $0x10] sm:$0xff]
    %v261 = vld [vmem:[%s251 + $0x18] sm:$0xff]
    %266 = vrot.lane.b32.xlu0 %v258, 127
    %v267 = vpop.permute.xlu0 %266
    %268 = vrot.lane.b32.xlu0 %v259, 127
    %v269 = vpop.permute.xlu0 %268
    %270 = vrot.lane.b32.xlu0 %v260, 127
    %v271 = vpop.permute.xlu0 %270
    %272 = vrot.lane.b32.xlu0 %v261, 127
    %v273 = vpop.permute.xlu0 %272
    %v274 = vsel %vm59, %v267, %v269
    %v275 = vsel %vm59, %v269, %v271
    %v276 = vsel %vm59, %v271, %v273
    %280 = vst [vmem:[#allocation2 + $0x48] sm:$0xff] %v274
    %281 = vst [vmem:[#allocation2 + $0x50] sm:$0xff] %v275
    %282 = vst [vmem:[#allocation2 + $0x58] sm:$0xff] %v276
    %v283 = vld [vmem:[%s251] sm:$0xff]
    %v284 = vld [vmem:[%s251 + $0x8] sm:$0xff]
    %v285 = vld [vmem:[%s251 + $0x10] sm:$0xff]
    %v286 = vld [vmem:[%s251 + $0x18] sm:$0xff]
    %291 = vrot.lane.b32.xlu0 %v283, 126
    %v292 = vpop.permute.xlu0 %291
    %293 = vrot.lane.b32.xlu0 %v284, 126
    %v294 = vpop.permute.xlu0 %293
    %295 = vrot.lane.b32.xlu0 %v285, 126
    %v296 = vpop.permute.xlu0 %295
    %297 = vrot.lane.b32.xlu0 %v286, 126
    %v298 = vpop.permute.xlu0 %297
    %v299 = vsel %vm85, %v292, %v294
    %v300 = vsel %vm85, %v294, %v296
    %v301 = vsel %vm85, %v296, %v298
    %305 = vst [vmem:[#allocation2 + $0x78] sm:$0xff] %v299
    %306 = vst [vmem:[#allocation2 + $0x80] sm:$0xff] %v300
    %307 = vst [vmem:[#allocation2 + $0x88] sm:$0xff] %v301
    %v308 = vld [vmem:[%s251] sm:$0xff]
    %v309 = vld [vmem:[%s251 + $0x8] sm:$0xff]
    %v310 = vld [vmem:[%s251 + $0x10] sm:$0xff]
    %v311 = vld [vmem:[%s251 + $0x18] sm:$0xff]
    %316 = vrot.lane.b32.xlu0 %v308, 110
    %v317 = vpop.permute.xlu0 %316
    %318 = vrot.lane.b32.xlu0 %v309, 110
    %v319 = vpop.permute.xlu0 %318
    %320 = vrot.lane.b32.xlu0 %v310, 110
    %v321 = vpop.permute.xlu0 %320
    %322 = vrot.lane.b32.xlu0 %v311, 110
    %v323 = vpop.permute.xlu0 %322
    %v324 = vsel %vm111, %v317, %v319
    %v325 = vsel %vm111, %v319, %v321
    %v326 = vsel %vm111, %v321, %v323
    %330 = vst [vmem:[#allocation2 + $0xa8] sm:$0xff] %v324
    %331 = vst [vmem:[#allocation2 + $0xb0] sm:$0xff] %v325
    %332 = vst [vmem:[#allocation2 + $0xb8] sm:$0xff] %v326
    %v333 = vld [vmem:[%s251] sm:$0xff]
    %v334 = vld [vmem:[%s251 + $0x8] sm:$0xff]
    %v335 = vld [vmem:[%s251 + $0x10] sm:$0xff]
    %v336 = vld [vmem:[%s251 + $0x18] sm:$0xff]
    %341 = vrot.lane.b32.xlu0 %v333, 109
    %v342 = vpop.permute.xlu0 %341
    %343 = vrot.lane.b32.xlu0 %v334, 109
    %v344 = vpop.permute.xlu0 %343
    %345 = vrot.lane.b32.xlu0 %v335, 109
    %v346 = vpop.permute.xlu0 %345
    %347 = vrot.lane.b32.xlu0 %v336, 109
    %v348 = vpop.permute.xlu0 %347
    %v349 = vsel %vm137, %v342, %v344
    %v350 = vsel %vm137, %v344, %v346
    %v351 = vsel %vm137, %v346, %v348
    %355 = vst [vmem:[#allocation2 + $0xd8] sm:$0xff] %v349
    %356 = vst [vmem:[#allocation2 + $0xe0] sm:$0xff] %v350
    %357 = vst [vmem:[#allocation2 + $0xe8] sm:$0xff] %v351
    %v358 = vld [vmem:[%s251] sm:$0xff]
    %v359 = vld [vmem:[%s251 + $0x8] sm:$0xff]
    %v360 = vld [vmem:[%s251 + $0x10] sm:$0xff]
    %v361 = vld [vmem:[%s251 + $0x18] sm:$0xff]
    %366 = vrot.lane.b32.xlu0 %v358, 108
    %v367 = vpop.permute.xlu0 %366
    %368 = vrot.lane.b32.xlu0 %v359, 108
    %v369 = vpop.permute.xlu0 %368
    %370 = vrot.lane.b32.xlu0 %v360, 108
    %v371 = vpop.permute.xlu0 %370
    %372 = vrot.lane.b32.xlu0 %v361, 108
    %v373 = vpop.permute.xlu0 %372
    %v374 = vsel %vm163, %v367, %v369
    %v375 = vsel %vm163, %v369, %v371
    %v376 = vsel %vm163, %v371, %v373
    %380 = vst [vmem:[#allocation2 + $0x108] sm:$0xff] %v374
    %381 = vst [vmem:[#allocation2 + $0x110] sm:$0xff] %v375
    %382 = vst [vmem:[#allocation2 + $0x118] sm:$0xff] %v376
    %v383 = vld [vmem:[%s251] sm:$0xff]
    %v384 = vld [vmem:[%s251 + $0x8] sm:$0xff]
    %v385 = vld [vmem:[%s251 + $0x10] sm:$0xff]
    %v386 = vld [vmem:[%s251 + $0x18] sm:$0xff]
    %391 = vrot.lane.b32.xlu0 %v383, 92
    %v392 = vpop.permute.xlu0 %391
    %393 = vrot.lane.b32.xlu0 %v384, 92
    %v394 = vpop.permute.xlu0 %393
    %395 = vrot.lane.b32.xlu0 %v385, 92
    %v396 = vpop.permute.xlu0 %395
    %397 = vrot.lane.b32.xlu0 %v386, 92
    %v398 = vpop.permute.xlu0 %397
    %v399 = vsel %vm189, %v392, %v394
    %v400 = vsel %vm189, %v394, %v396
    %v401 = vsel %vm189, %v396, %v398
    %405 = vst [vmem:[#allocation2 + $0x138] sm:$0xff] %v399
    %406 = vst [vmem:[#allocation2 + $0x140] sm:$0xff] %v400
    %407 = vst [vmem:[#allocation2 + $0x148] sm:$0xff] %v401
    %v408 = vld [vmem:[%s251] sm:$0xff]
    %v409 = vld [vmem:[%s251 + $0x8] sm:$0xff]
    %v410 = vld [vmem:[%s251 + $0x10] sm:$0xff]
    %v411 = vld [vmem:[%s251 + $0x18] sm:$0xff]
    %416 = vrot.lane.b32.xlu0 %v408, 91
    %v417 = vpop.permute.xlu0 %416
    %418 = vrot.lane.b32.xlu0 %v409, 91
    %v419 = vpop.permute.xlu0 %418
    %420 = vrot.lane.b32.xlu0 %v410, 91
    %v421 = vpop.permute.xlu0 %420
    %422 = vrot.lane.b32.xlu0 %v411, 91
    %v423 = vpop.permute.xlu0 %422
    %v424 = vsel %vm215, %v417, %v419
    %v425 = vsel %vm215, %v419, %v421
    %v426 = vsel %vm215, %v421, %v423
    %430 = vst [vmem:[#allocation2 + $0x168] sm:$0xff] %v424
    %431 = vst [vmem:[#allocation2 + $0x170] sm:$0xff] %v425
    %432 = vst [vmem:[#allocation2 + $0x178] sm:$0xff] %v426
    %v433 = vld [vmem:[%s251] sm:$0xff]
    %v434 = vld [vmem:[%s251 + $0x8] sm:$0xff]
    %v435 = vld [vmem:[%s251 + $0x10] sm:$0xff]
    %v436 = vld [vmem:[%s251 + $0x18] sm:$0xff]
    %441 = vrot.lane.b32.xlu0 %v433, 90
    %v442 = vpop.permute.xlu0 %441
    %443 = vrot.lane.b32.xlu0 %v434, 90
    %v444 = vpop.permute.xlu0 %443
    %445 = vrot.lane.b32.xlu0 %v435, 90
    %v446 = vpop.permute.xlu0 %445
    %447 = vrot.lane.b32.xlu0 %v436, 90
    %v448 = vpop.permute.xlu0 %447
    %v449 = vsel %vm241, %v442, %v444
    %v450 = vsel %vm241, %v444, %v446
    %v451 = vsel %vm241, %v446, %v448
    %455 = vst [vmem:[#allocation2 + $0x198] sm:$0xff] %v449
    %456 = vst [vmem:[#allocation2 + $0x1a0] sm:$0xff] %v450
    %457 = vst [vmem:[#allocation2 + $0x1a8] sm:$0xff] %v451
    %v458 = vld [vmem:[%s1] sm:$0xff]
    %v459 = vld [vmem:[%s1 + $0x8] sm:$0xff]
    %v460 = vld [vmem:[%s1 + $0x10] sm:$0xff]
    %v461 = vld [vmem:[#allocation2] sm:$0xff]
    %v462 = vld [vmem:[#allocation2 + $0x8] sm:$0xff]
    %v463 = vld [vmem:[#allocation2 + $0x10] sm:$0xff]
    %v464 = vld [vmem:[#allocation2 + $0x18] sm:$0xff]
    %v465 = vld [vmem:[#allocation2 + $0x20] sm:$0xff]
    %v466 = vld [vmem:[#allocation2 + $0x28] sm:$0xff]
    %v467 = vld [vmem:[#allocation2 + $0x30] sm:$0xff]
    %v468 = vld [vmem:[#allocation2 + $0x38] sm:$0xff]
    %v469 = vld [vmem:[#allocation2 + $0x40] sm:$0xff]
    %v470 = vld [vmem:[#allocation2 + $0x48] sm:$0xff]
    %v471 = vld [vmem:[#allocation2 + $0x50] sm:$0xff]
    %v472 = vld [vmem:[#allocation2 + $0x58] sm:$0xff]
    %v473 = vld [vmem:[#allocation2 + $0x60] sm:$0xff]
    %v474 = vld [vmem:[#allocation2 + $0x68] sm:$0xff]
    %v475 = vld [vmem:[#allocation2 + $0x70] sm:$0xff]
    %v476 = vld [vmem:[#allocation2 + $0x78] sm:$0xff]
    %v477 = vld [vmem:[#allocation2 + $0x80] sm:$0xff]
    %v478 = vld [vmem:[#allocation2 + $0x88] sm:$0xff]
    %v479 = vld [vmem:[#allocation2 + $0x90] sm:$0xff]
    %v480 = vld [vmem:[#allocation2 + $0x98] sm:$0xff]
    %v481 = vld [vmem:[#allocation2 + $0xa0] sm:$0xff]
    %v482 = vld [vmem:[#allocation2 + $0xa8] sm:$0xff]
    %v483 = vld [vmem:[#allocation2 + $0xb0] sm:$0xff]
    %v484 = vld [vmem:[#allocation2 + $0xb8] sm:$0xff]
    %v485 = vld [vmem:[#allocation2 + $0xc0] sm:$0xff]
    %v486 = vld [vmem:[#allocation2 + $0xc8] sm:$0xff]
    %v487 = vld [vmem:[#allocation2 + $0xd0] sm:$0xff]
    %v488 = vld [vmem:[#allocation2 + $0xd8] sm:$0xff]
    %v489 = vld [vmem:[#allocation2 + $0xe0] sm:$0xff]
    %v490 = vld [vmem:[#allocation2 + $0xe8] sm:$0xff]
    %v491 = vld [vmem:[#allocation2 + $0xf0] sm:$0xff]
    %v492 = vld [vmem:[#allocation2 + $0xf8] sm:$0xff]
    %v493 = vld [vmem:[#allocation2 + $0x100] sm:$0xff]
    %v494 = vld [vmem:[#allocation2 + $0x108] sm:$0xff]
    %v495 = vld [vmem:[#allocation2 + $0x110] sm:$0xff]
    %v496 = vld [vmem:[#allocation2 + $0x118] sm:$0xff]
    %v497 = vld [vmem:[#allocation2 + $0x120] sm:$0xff]
    %v498 = vld [vmem:[#allocation2 + $0x128] sm:$0xff]
    %v499 = vld [vmem:[#allocation2 + $0x130] sm:$0xff]
    %v500 = vld [vmem:[#allocation2 + $0x138] sm:$0xff]
    %v501 = vld [vmem:[#allocation2 + $0x140] sm:$0xff]
    %v502 = vld [vmem:[#allocation2 + $0x148] sm:$0xff]
    %v503 = vld [vmem:[#allocation2 + $0x150] sm:$0xff]
    %v504 = vld [vmem:[#allocation2 + $0x158] sm:$0xff]
    %v505 = vld [vmem:[#allocation2 + $0x160] sm:$0xff]
    %v506 = vld [vmem:[#allocation2 + $0x168] sm:$0xff]
    %v507 = vld [vmem:[#allocation2 + $0x170] sm:$0xff]
    %v508 = vld [vmem:[#allocation2 + $0x178] sm:$0xff]
    %v509 = vld [vmem:[#allocation2 + $0x180] sm:$0xff]
    %v510 = vld [vmem:[#allocation2 + $0x188] sm:$0xff]
    %v511 = vld [vmem:[#allocation2 + $0x190] sm:$0xff]
    %v512 = vld [vmem:[#allocation2 + $0x198] sm:$0xff]
    %v513 = vld [vmem:[#allocation2 + $0x1a0] sm:$0xff]
    %v514 = vld [vmem:[#allocation2 + $0x1a8] sm:$0xff]
    %v515 = vld [vmem:[%s2] sm:$0xff]
    %v516 = vld [vmem:[%s2 + $0x8] sm:$0xff]
    %v517 = vld [vmem:[%s2 + $0x10] sm:$0xff]
    %519 = vset.pattern.permute.xlu0 0
    %520 = vperm.xlu0 %519, %v515
    %v521 = vpop.permute.xlu0 %520
    %524 = vset.pattern.permute.xlu0 0
    %525 = vperm.xlu0 %524, %v516
    %v526 = vpop.permute.xlu0 %525
    %529 = vset.pattern.permute.xlu0 0
    %530 = vperm.xlu0 %529, %v517
    %v531 = vpop.permute.xlu0 %530
    %vm533 = vcmask 588800
    %v535 = vsel %vm533, %v458, 0
    %v538 = vsel %vm533, %v459, 0
    %v541 = vsel %vm533, %v460, 0
    %543 = vmatpush.msra.mxu0 0.0
    %544 = vmatpush.msra.mxu0 0.0
    %545 = vmatpush.msra.mxu0 0.0
    %546 = vmatpush.msra.mxu0 0.0
    %547 = vmatpush.msra.mxu0 0.0
    %548 = vmatpush.msra.mxu0 0.0
    %549 = vmatpush.msra.mxu0 0.0
    %550 = vmatpush.msra.mxu0 %v509
    %551 = vmatpush.msra.mxu0 %v503
    %552 = vmatpush.msra.mxu0 %v497
    %553 = vmatpush.msra.mxu0 %v491
    %554 = vmatpush.msra.mxu0 %v485
    %555 = vmatpush.msra.mxu0 %v479
    %556 = vmatpush.msra.mxu0 %v473
    %557 = vmatpush.msra.mxu0 %v467
    %558 = vmatpush.msra.mxu0 %v461
    %559 = vmatmul.f32.gmra.mxu0 %v535
    %v560 = vpop.f32.mrf.mxu0
    %v561 = vadd.f32 %v521, %v560
    %562 = vmatmul.f32.gmra.mxu0 %v538
    %v563 = vpop.f32.mrf.mxu0
    %v564 = vadd.f32 %v526, %v563
    %565 = vmatmul.f32.gmra.mxu0 %v541
    %v566 = vpop.f32.mrf.mxu0
    %v567 = vadd.f32 %v531, %v566
    %568 = vdwg.mxu0
    %569 = vmatpush.msra.mxu0 0.0
    %570 = vmatpush.msra.mxu0 0.0
    %571 = vmatpush.msra.mxu0 0.0
    %572 = vmatpush.msra.mxu0 0.0
    %573 = vmatpush.msra.mxu0 0.0
    %574 = vmatpush.msra.mxu0 0.0
    %575 = vmatpush.msra.mxu0 0.0
    %576 = vmatpush.msra.mxu0 %v510
    %577 = vmatpush.msra.mxu0 %v504
    %578 = vmatpush.msra.mxu0 %v498
    %579 = vmatpush.msra.mxu0 %v492
    %580 = vmatpush.msra.mxu0 %v486
    %581 = vmatpush.msra.mxu0 %v480
    %582 = vmatpush.msra.mxu0 %v474
    %583 = vmatpush.msra.mxu0 %v468
    %584 = vmatpush.msra.mxu0 %v462
    %585 = vmatmul.f32.gmra.mxu0 %v535
    %v586 = vpop.f32.mrf.mxu0
    %v587 = vadd.f32 %v521, %v586
    %588 = vmatmul.f32.gmra.mxu0 %v538
    %v589 = vpop.f32.mrf.mxu0
    %v590 = vadd.f32 %v526, %v589
    %591 = vmatmul.f32.gmra.mxu0 %v541
    %v592 = vpop.f32.mrf.mxu0
    %v593 = vadd.f32 %v531, %v592
    %594 = vdwg.mxu0
    %595 = vmatpush.msra.mxu0 0.0
    %596 = vmatpush.msra.mxu0 0.0
    %597 = vmatpush.msra.mxu0 0.0
    %598 = vmatpush.msra.mxu0 0.0
    %599 = vmatpush.msra.mxu0 0.0
    %600 = vmatpush.msra.mxu0 0.0
    %601 = vmatpush.msra.mxu0 0.0
    %602 = vmatpush.msra.mxu0 %v511
    %603 = vmatpush.msra.mxu0 %v505
    %604 = vmatpush.msra.mxu0 %v499
    %605 = vmatpush.msra.mxu0 %v493
    %606 = vmatpush.msra.mxu0 %v487
    %607 = vmatpush.msra.mxu0 %v481
    %608 = vmatpush.msra.mxu0 %v475
    %609 = vmatpush.msra.mxu0 %v469
    %610 = vmatpush.msra.mxu0 %v463
    %611 = vmatmul.f32.gmra.mxu0 %v535
    %v612 = vpop.f32.mrf.mxu0
    %v613 = vadd.f32 %v521, %v612
    %614 = vmatmul.f32.gmra.mxu0 %v538
    %v615 = vpop.f32.mrf.mxu0
    %v616 = vadd.f32 %v526, %v615
    %617 = vmatmul.f32.gmra.mxu0 %v541
    %v618 = vpop.f32.mrf.mxu0
    %v619 = vadd.f32 %v531, %v618
    %620 = vdwg.mxu0
    %621 = vmatpush.msra.mxu0 0.0
    %622 = vmatpush.msra.mxu0 0.0
    %623 = vmatpush.msra.mxu0 0.0
    %624 = vmatpush.msra.mxu0 0.0
    %625 = vmatpush.msra.mxu0 0.0
    %626 = vmatpush.msra.mxu0 0.0
    %627 = vmatpush.msra.mxu0 0.0
    %628 = vmatpush.msra.mxu0 %v512
    %629 = vmatpush.msra.mxu0 %v506
    %630 = vmatpush.msra.mxu0 %v500
    %631 = vmatpush.msra.mxu0 %v494
    %632 = vmatpush.msra.mxu0 %v488
    %633 = vmatpush.msra.mxu0 %v482
    %634 = vmatpush.msra.mxu0 %v476
    %635 = vmatpush.msra.mxu0 %v470
    %636 = vmatpush.msra.mxu0 %v464
    %637 = vmatmul.f32.gmra.mxu0 %v535
    %v638 = vpop.f32.mrf.mxu0
    %v639 = vadd.f32 %v521, %v638
    %640 = vmatmul.f32.gmra.mxu0 %v538
    %v641 = vpop.f32.mrf.mxu0
    %v642 = vadd.f32 %v526, %v641
    %643 = vmatmul.f32.gmra.mxu0 %v541
    %v644 = vpop.f32.mrf.mxu0
    %v645 = vadd.f32 %v531, %v644
    %646 = vdwg.mxu0
    %647 = vmatpush.msra.mxu0 0.0
    %648 = vmatpush.msra.mxu0 0.0
    %649 = vmatpush.msra.mxu0 0.0
    %650 = vmatpush.msra.mxu0 0.0
    %651 = vmatpush.msra.mxu0 0.0
    %652 = vmatpush.msra.mxu0 0.0
    %653 = vmatpush.msra.mxu0 0.0
    %654 = vmatpush.msra.mxu0 %v513
    %655 = vmatpush.msra.mxu0 %v507
    %656 = vmatpush.msra.mxu0 %v501
    %657 = vmatpush.msra.mxu0 %v495
    %658 = vmatpush.msra.mxu0 %v489
    %659 = vmatpush.msra.mxu0 %v483
    %660 = vmatpush.msra.mxu0 %v477
    %661 = vmatpush.msra.mxu0 %v471
    %662 = vmatpush.msra.mxu0 %v465
    %663 = vmatmul.f32.gmra.mxu0 %v535
    %v664 = vpop.f32.mrf.mxu0
    %v665 = vadd.f32 %v521, %v664
    %666 = vmatmul.f32.gmra.mxu0 %v538
    %v667 = vpop.f32.mrf.mxu0
    %v668 = vadd.f32 %v526, %v667
    %669 = vmatmul.f32.gmra.mxu0 %v541
    %v670 = vpop.f32.mrf.mxu0
    %v671 = vadd.f32 %v531, %v670
    %672 = vdwg.mxu0
    %673 = vmatpush.msra.mxu0 0.0
    %674 = vmatpush.msra.mxu0 0.0
    %675 = vmatpush.msra.mxu0 0.0
    %676 = vmatpush.msra.mxu0 0.0
    %677 = vmatpush.msra.mxu0 0.0
    %678 = vmatpush.msra.mxu0 0.0
    %679 = vmatpush.msra.mxu0 0.0
    %680 = vmatpush.msra.mxu0 %v514
    %681 = vmatpush.msra.mxu0 %v508
    %682 = vmatpush.msra.mxu0 %v502
    %683 = vmatpush.msra.mxu0 %v496
    %684 = vmatpush.msra.mxu0 %v490
    %685 = vmatpush.msra.mxu0 %v484
    %686 = vmatpush.msra.mxu0 %v478
    %687 = vmatpush.msra.mxu0 %v472
    %688 = vmatpush.msra.mxu0 %v466
    %689 = vmatmul.f32.gmra.mxu0 %v535
    %v690 = vpop.f32.mrf.mxu0
    %v691 = vadd.f32 %v521, %v690
    %692 = vmatmul.f32.gmra.mxu0 %v538
    %v693 = vpop.f32.mrf.mxu0
    %v694 = vadd.f32 %v526, %v693
    %695 = vmatmul.f32.gmra.mxu0 %v541
    %v696 = vpop.f32.mrf.mxu0
    %v697 = vadd.f32 %v531, %v696
    %698 = vdwg.mxu0
    %v699 = vmax.f32 %v561, 0.0
    %v700 = vmax.f32 %v587, 0.0
    %v701 = vmax.f32 %v613, 0.0
    %v702 = vmax.f32 %v639, 0.0
    %v703 = vmax.f32 %v665, 0.0
    %v704 = vmax.f32 %v691, 0.0
    %v705 = vmax.f32 %v564, 0.0
    %v706 = vmax.f32 %v590, 0.0
    %v707 = vmax.f32 %v616, 0.0
    %v708 = vmax.f32 %v642, 0.0
    %v709 = vmax.f32 %v668, 0.0
    %v710 = vmax.f32 %v694, 0.0
    %v711 = vmax.f32 %v567, 0.0
    %v712 = vmax.f32 %v593, 0.0
    %v713 = vmax.f32 %v619, 0.0
    %v714 = vmax.f32 %v645, 0.0
    %v715 = vmax.f32 %v671, 0.0
    %v716 = vmax.f32 %v697, 0.0
    %v717 = vld [vmem:[%s3] sm:$0xff]
    %v718 = vld [vmem:[%s4] sm:$0xff]
    %720 = vset.pattern.permute.xlu0 0
    %721 = vperm.xlu0 %720, %v718
    %v722 = vpop.permute.xlu0 %721
    %vm724 = vcmask 195584
    %v726 = vsel %vm724, %v717, 0
    %728 = vmatpush.msra.mxu0 0.0
    %729 = vmatpush.msra.mxu0 0.0
    %730 = vmatpush.msra.mxu0 0.0
    %731 = vmatpush.msra.mxu0 0.0
    %732 = vmatpush.msra.mxu0 0.0
    %733 = vmatpush.msra.mxu0 0.0
    %734 = vmatpush.msra.mxu0 0.0
    %735 = vmatpush.msra.mxu0 0.0
    %736 = vmatpush.msra.mxu0 0.0
    %737 = vmatpush.msra.mxu0 0.0
    %738 = vmatpush.msra.mxu0 0.0
    %739 = vmatpush.msra.mxu0 0.0
    %740 = vmatpush.msra.mxu0 0.0
    %741 = vmatpush.msra.mxu0 %v711
    %742 = vmatpush.msra.mxu0 %v705
    %743 = vmatpush.msra.mxu0 %v699
    %744 = vmatmul.f32.gmra.mxu0 %v726
    %v745 = vpop.f32.mrf.mxu0
    %v746 = vadd.f32 %v722, %v745
    %747 = vdwg.mxu0
    %748 = vmatpush.msra.mxu0 0.0
    %749 = vmatpush.msra.mxu0 0.0
    %750 = vmatpush.msra.mxu0 0.0
    %751 = vmatpush.msra.mxu0 0.0
    %752 = vmatpush.msra.mxu0 0.0
    %753 = vmatpush.msra.mxu0 0.0
    %754 = vmatpush.msra.mxu0 0.0
    %755 = vmatpush.msra.mxu0 0.0
    %756 = vmatpush.msra.mxu0 0.0
    %757 = vmatpush.msra.mxu0 0.0
    %758 = vmatpush.msra.mxu0 0.0
    %759 = vmatpush.msra.mxu0 0.0
    %760 = vmatpush.msra.mxu0 0.0
    %761 = vmatpush.msra.mxu0 %v712
    %762 = vmatpush.msra.mxu0 %v706
    %763 = vmatpush.msra.mxu0 %v700
    %764 = vmatmul.f32.gmra.mxu0 %v726
    %v765 = vpop.f32.mrf.mxu0
    %v766 = vadd.f32 %v722, %v765
    %767 = vdwg.mxu0
    %768 = vmatpush.msra.mxu0 0.0
    %769 = vmatpush.msra.mxu0 0.0
    %770 = vmatpush.msra.mxu0 0.0
    %771 = vmatpush.msra.mxu0 0.0
    %772 = vmatpush.msra.mxu0 0.0
    %773 = vmatpush.msra.mxu0 0.0
    %774 = vmatpush.msra.mxu0 0.0
    %775 = vmatpush.msra.mxu0 0.0
    %776 = vmatpush.msra.mxu0 0.0
    %777 = vmatpush.msra.mxu0 0.0
    %778 = vmatpush.msra.mxu0 0.0
    %779 = vmatpush.msra.mxu0 0.0
    %780 = vmatpush.msra.mxu0 0.0
    %781 = vmatpush.msra.mxu0 %v713
    %782 = vmatpush.msra.mxu0 %v707
    %783 = vmatpush.msra.mxu0 %v701
    %784 = vmatmul.f32.gmra.mxu0 %v726
    %v785 = vpop.f32.mrf.mxu0
    %v786 = vadd.f32 %v722, %v785
    %787 = vdwg.mxu0
    %788 = vmatpush.msra.mxu0 0.0
    %789 = vmatpush.msra.mxu0 0.0
    %790 = vmatpush.msra.mxu0 0.0
    %791 = vmatpush.msra.mxu0 0.0
    %792 = vmatpush.msra.mxu0 0.0
    %793 = vmatpush.msra.mxu0 0.0
    %794 = vmatpush.msra.mxu0 0.0
    %795 = vmatpush.msra.mxu0 0.0
    %796 = vmatpush.msra.mxu0 0.0
    %797 = vmatpush.msra.mxu0 0.0
    %798 = vmatpush.msra.mxu0 0.0
    %799 = vmatpush.msra.mxu0 0.0
    %800 = vmatpush.msra.mxu0 0.0
    %801 = vmatpush.msra.mxu0 %v714
    %802 = vmatpush.msra.mxu0 %v708
    %803 = vmatpush.msra.mxu0 %v702
    %804 = vmatmul.f32.gmra.mxu0 %v726
    %v805 = vpop.f32.mrf.mxu0
    %v806 = vadd.f32 %v722, %v805
    %807 = vdwg.mxu0
    %808 = vmatpush.msra.mxu0 0.0
    %809 = vmatpush.msra.mxu0 0.0
    %810 = vmatpush.msra.mxu0 0.0
    %811 = vmatpush.msra.mxu0 0.0
    %812 = vmatpush.msra.mxu0 0.0
    %813 = vmatpush.msra.mxu0 0.0
    %814 = vmatpush.msra.mxu0 0.0
    %815 = vmatpush.msra.mxu0 0.0
    %816 = vmatpush.msra.mxu0 0.0
    %817 = vmatpush.msra.mxu0 0.0
    %818 = vmatpush.msra.mxu0 0.0
    %819 = vmatpush.msra.mxu0 0.0
    %820 = vmatpush.msra.mxu0 0.0
    %821 = vmatpush.msra.mxu0 %v715
    %822 = vmatpush.msra.mxu0 %v709
    %823 = vmatpush.msra.mxu0 %v703
    %824 = vmatmul.f32.gmra.mxu0 %v726
    %v825 = vpop.f32.mrf.mxu0
    %v826 = vadd.f32 %v722, %v825
    %827 = vdwg.mxu0
    %828 = vmatpush.msra.mxu0 0.0
    %829 = vmatpush.msra.mxu0 0.0
    %830 = vmatpush.msra.mxu0 0.0
    %831 = vmatpush.msra.mxu0 0.0
    %832 = vmatpush.msra.mxu0 0.0
    %833 = vmatpush.msra.mxu0 0.0
    %834 = vmatpush.msra.mxu0 0.0
    %835 = vmatpush.msra.mxu0 0.0
    %836 = vmatpush.msra.mxu0 0.0
    %837 = vmatpush.msra.mxu0 0.0
    %838 = vmatpush.msra.mxu0 0.0
    %839 = vmatpush.msra.mxu0 0.0
    %840 = vmatpush.msra.mxu0 0.0
    %841 = vmatpush.msra.mxu0 %v716
    %842 = vmatpush.msra.mxu0 %v710
    %843 = vmatpush.msra.mxu0 %v704
    %844 = vmatmul.f32.gmra.mxu0 %v726
    %v845 = vpop.f32.mrf.mxu0
    %v846 = vadd.f32 %v722, %v845
    %847 = vdwg.mxu0
    %v848 = vmax.f32 %v746, 0.0
    %v849 = vmax.f32 %v766, 0.0
    %v850 = vmax.f32 %v786, 0.0
    %v851 = vmax.f32 %v806, 0.0
    %v852 = vmax.f32 %v826, 0.0
    %v853 = vmax.f32 %v846, 0.0
    %854 = vst [vmem:[#allocation6] sm:$0xff] %v848
    %855 = vst [vmem:[#allocation6 + $0x8] sm:$0xff] %v849
    %856 = vst [vmem:[#allocation6 + $0x10] sm:$0xff] %v850
    %s857 = scalar_lea.vmem [#allocation6], 24
    %858 = vst [vmem:[%s857] sm:$0xff] %v851
    %859 = vst [vmem:[%s857 + $0x8] sm:$0xff] %v852
    %860 = vst [vmem:[%s857 + $0x10] sm:$0xff] %v853
    // Predicated region
    $region26: #{tpu_custom_call.1} parent=1 // pred_check
      _
    $region27: #{tpu_custom_call.1} parent=1 // pred_check_branch
      %862 = sbr.rel (0) target = $region29
    $region28: #{tpu_custom_call.1} parent=1 // pred_region
      %864 = vsyncadd [#allocation5], 0
      %s865 = sshll.u32 [#allocation6], 4
      %s866 = int_to_ptr.vmem [resolvable:$true] %s865
      %s867 = sshll.u32 %s5, 4
      %s868 = int_to_ptr.hbm [resolvable:$true] %s867
      %873 = dma.vmem_to_hbm [thread:$0]  %s866, 768, %s868, [#allocation5], 384, 384, 24
    $region29: #{tpu_custom_call.1} parent=1 // pred_fallthru
      _
    // Predicated region
    $region30: #{tpu_custom_call.1} parent=1 // pred_check
      _
    $region31: #{tpu_custom_call.1} parent=1 // pred_check_branch
      %875 = sbr.rel (0) target = $region33
    $region32: #{tpu_custom_call.1} parent=1 // pred_region
      %877 = dma.done [#allocation5], 768
    $region33: #{tpu_custom_call.1} parent=1 // pred_fallthru
      _
    %878 = vsyncpa [#allocation4], 1
    %879 = vsyncpa [#allocation5], 1

</llo_original>
